<compile_context>
chip_gen: v6e
topology: v6e:2x2x1
jax: 0.10.0
libtpu: 0.0.40
codegen_flags: <defaults>
</compile_context>

<pallas_src>
import math

import jax
import jax.numpy as jnp
from jax.experimental import pallas as pl
from jax.experimental.pallas import tpu as pltpu


_LANE = 128


def _gen_params():
    """Generation-aware scoped-VMEM limit and column-tile cap."""
    vmem_cap = 64 * 1024 * 1024
    try:
        info = pltpu.get_tpu_info()
        vmem_cap = int(getattr(info, "vmem_capacity_bytes", vmem_cap))
    except Exception:
        pass
    limit = max(16 * 1024 * 1024, min(int(vmem_cap * 3 // 4), 96 * 1024 * 1024))
    if vmem_cap >= 100 * 1024 * 1024:        # v5e / v6e: 128 MiB physical VMEM
        col_cap = 8192
    elif vmem_cap >= 48 * 1024 * 1024:       # v7x: 64 MiB physical VMEM
        col_cap = 4096
    else:                                    # older / unknown parts
        col_cap = 2048
    return limit, col_cap


_VMEM_LIMIT_BYTES, _COL_CAP = _gen_params()


# ----------------------------------------------------------------------------
# Plain-JAX glue: sampling & grouping (mirrors the PyTorch helpers)
# ----------------------------------------------------------------------------
def get_dists(points1, points2):
    # points1: (B, M, C), points2: (B, N, C) -> (B, M, N)
    d = (jnp.sum(points1 ** 2, axis=-1)[:, :, None]
         + jnp.sum(points2 ** 2, axis=-1)[:, None, :])
    d = d - 2.0 * jnp.einsum("bmc,bnc->bmn", points1, points2)
    d = jnp.where(d < 0, jnp.full_like(d, 1e-07), d)
    return jnp.sqrt(d).astype(jnp.float32)


def fps(xyz, M):
    # TODO(synk): torch uses torch.randint for the initial FPS seed; a
    # deterministic initial index 0 per batch is used instead.
    B, N, _ = xyz.shape
    centroids = jnp.zeros((B, M), dtype=jnp.int32)
    dists = jnp.full((B, N), 1e5, dtype=jnp.float32)
    inds = jnp.zeros((B,), dtype=jnp.int32)

    def body(i, carry):
        centroids, dists, inds = carry
        centroids = centroids.at[:, i].set(inds)
        cur_point = jnp.take_along_axis(xyz, inds[:, None, None], axis=1)  # (B,1,3)
        cur_dist = get_dists(cur_point, xyz)[:, 0, :]                      # (B,N)
        dists = jnp.minimum(dists, cur_dist)
        inds = jnp.argmax(dists, axis=1).astype(jnp.int32)
        return centroids, dists, inds

    centroids, _, _ = jax.lax.fori_loop(0, M, body, (centroids, dists, inds))
    return centroids


def gather_points(points, inds):
    # points: (B, N, C); inds: (B, M) or (B, M, K)
    B, N, C = points.shape
    if inds.ndim == 2:
        return jnp.take_along_axis(points, inds[..., None], axis=1)
    Bm, M, K = inds.shape
    flat = inds.reshape(Bm, M * K)
    g = jnp.take_along_axis(points, flat[..., None], axis=1)
    return g.reshape(Bm, M, K, C)


def ball_query(xyz, new_xyz, radius, K):
    B, N, _ = xyz.shape
    M = new_xyz.shape[1]
    grouped_inds = jnp.broadcast_to(jnp.arange(N, dtype=jnp.int32), (B, M, N))
    dists = get_dists(new_xyz, xyz)
    grouped_inds = jnp.where(dists > radius, N, grouped_inds)
    grouped_inds = jnp.sort(grouped_inds, axis=-1)[:, :, :K]
    grouped_min = jnp.broadcast_to(grouped_inds[:, :, 0:1], grouped_inds.shape)
    grouped_inds = jnp.where(grouped_inds == N, grouped_min, grouped_inds)
    return grouped_inds


def sample_and_group(xyz, points, M, radius, K, use_xyz=True):
    new_xyz = gather_points(xyz, fps(xyz, M))
    grouped_inds = ball_query(xyz, new_xyz, radius, K)
    grouped_xyz = gather_points(xyz, grouped_inds)
    grouped_xyz = grouped_xyz - new_xyz[:, :, None, :]
    if points is not None:
        grouped_points = gather_points(points, grouped_inds)
        if use_xyz:
            new_points = jnp.concatenate(
                [grouped_xyz.astype(jnp.float32), grouped_points.astype(jnp.float32)],
                axis=-1)
        else:
            new_points = grouped_points
    else:
        new_points = grouped_xyz
    return new_xyz, new_points, grouped_inds, grouped_xyz


def sample_and_group_all(xyz, points, use_xyz=True):
    B, M, C = xyz.shape
    new_xyz = jnp.zeros((B, 1, C), dtype=jnp.float32)
    grouped_inds = jnp.broadcast_to(jnp.arange(M, dtype=jnp.int32), (B, 1, M))
    grouped_xyz = xyz.reshape(B, 1, M, C)
    if points is not None:
        if use_xyz:
            new_points = jnp.concatenate(
                [xyz.astype(jnp.float32), points.astype(jnp.float32)], axis=2)
        else:
            new_points = points
        new_points = new_points[:, None, :, :]
    else:
        new_points = grouped_xyz
    return new_xyz, new_points, grouped_inds, grouped_xyz


# ----------------------------------------------------------------------------
# Quantize helpers (mirror Quantize.forward: round(v / s + z))
# ----------------------------------------------------------------------------
def _quant_params(vmin, vmax, nbits=8):
    """Scale / zero-point of Quantize.forward.  Guards the degenerate
    constant-tensor case with s=1 (a deliberate deviation: torch would NaN)."""
    q_max = float(2 ** (nbits - 1) - 1)
    q_min = float(-(2 ** (nbits - 1)))
    s = (vmax - vmin) / (q_max - q_min)
    s = jnp.where(s > 0, s, jnp.float32(1.0))
    z = -(vmin / s) + q_min
    return s.astype(jnp.float32), z.astype(jnp.float32)


def _round_up(x, m):
    return ((x + m - 1) // m) * m


def _plan_cols(bm_pad, k, bytes_per_col, col_cap, vmem_budget, kc_cap=None):
    """Pick (PT, KC): a block spans KC whole k-slabs of PT point-columns each.
    KC > 1 only when PT == bm_pad, so blocks stay contiguous in the k-major
    2-D slab.  PT is a multiple of 128 dividing bm_pad; KC divides k."""
    cap_cols = max(_LANE, min(col_cap, vmem_budget // max(1, bytes_per_col)))
    cap_cols = (cap_cols // _LANE) * _LANE
    if bm_pad <= cap_cols:
        pt = bm_pad
        max_kc = max(1, cap_cols // bm_pad)
        if kc_cap is not None:
            max_kc = min(max_kc, kc_cap)
        kc = 1
        for c in range(min(k, max_kc), 0, -1):
            if k % c == 0:
                kc = c
                break
    else:
        pt, kc = _LANE, 1
        t = _LANE
        while t <= cap_cols:
            if bm_pad % t == 0:
                pt = t
            t += _LANE
    return pt, kc


# ----------------------------------------------------------------------------
# Pallas kernels
# ----------------------------------------------------------------------------
def _make_layer_kernel(apply_prev_bn_relu, masked):
    """One backbone layer over one (c_prev, T) column block of the k-major slab:
       [BN+ReLU of the previous layer] -> Quantize(x) -> W_q @ x_q on the MXU
       -> bf16 y block + per-block partial per-channel stats (sum, sum^2, min, max).
    """
    def kernel(*refs):
        it = iter(refs)
        x_ref = next(it)
        w_ref = next(it)
        ab_ref = next(it) if apply_prev_bn_relu else None
        sz_ref = next(it)                                       # SMEM: (1/s, z)
        m_ref = next(it) if masked else None
        y_ref = next(it)
        st_ref = next(it)

        x = x_ref[...].astype(jnp.float32)                      # (c_prev, T)
        if apply_prev_bn_relu:
            ab = ab_ref[...]                                    # (c_prev, 2)
            x = jnp.maximum(ab[:, 0:1] * x + ab[:, 1:2], 0.0)   # fused prev BN+ReLU

        # Quantize: multiply by the precomputed 1/s (SMEM scalar), no divide.
        xq = jnp.round(x * sz_ref[0] + sz_ref[1])               # int8-range ints

        # int8-range integers are exact in bf16 -> full-rate MXU on every TPU
        # generation (v7x has no integer MXU path; the MXU is not the binding
        # unit here anyway, so no int8 path is attempted).
        y = jnp.dot(w_ref[...], xq.astype(jnp.bfloat16),
                    preferred_element_type=jnp.float32)         # (c_out, T) f32
        y_ref[...] = y.astype(y_ref.dtype)                      # bf16 slab store

        # Partial per-channel stats from the f32 accumulator (before the bf16
        # cast).  Pad columns are excluded so the BN batch stats / next layer's
        # Quantize range only ever see real elements.
        # TODO(synk): switch the fold to a Welford/Chan combine if the one-pass
        # E[y^2]-mean^2 variance ever loses precision at production sizes.
        if masked:
            m = m_ref[...]                                      # (1, T) 0/1 f32
            ym = y * m                                          # reused for sum & sum^2
            ysum = jnp.sum(ym, axis=1, keepdims=True)
            ysq = jnp.sum(ym * ym, axis=1, keepdims=True)
            valid = m > 0.5
            ymin = jnp.min(jnp.where(valid, y, jnp.inf), axis=1, keepdims=True)
            ymax = jnp.max(jnp.where(valid, y, -jnp.inf), axis=1, keepdims=True)
        else:
            ysum = jnp.sum(y, axis=1, keepdims=True)
            ysq = jnp.sum(y * y, axis=1, keepdims=True)
            ymin = jnp.min(y, axis=1, keepdims=True)
            ymax = jnp.max(y, axis=1, keepdims=True)
        # Stats stay channel-on-sublane: a sublane-major (4, c_out) stack would
        # need an XLU relayout of the lane-reduce results that costs about as
        # much as this tiny masked store.
        st_ref[0] = jnp.concatenate([ysum, ysq, ymin, ymax], axis=1)   # (c_out, 4)

    return kernel


def _make_pool_kernel(pooling, k_total, kc, pt):
    """Final sweep: last layer's BN + ReLU fused with the max/avg pool over K.
    Each block is (c_last, kc*pt): kc whole k-slabs are reduced in-kernel via a
    static unroll over 128-aligned lane slices; the remaining K/kc grid axis
    ("arbitrary") keeps a single output-resident accumulator block."""
    inv_k = 1.0 / float(k_total)

    def kernel(y_ref, ab_ref, o_ref):
        kci = pl.program_id(1)
        ab = ab_ref[...]                                        # (c_last, 2)
        a = ab[:, 0:1]
        b = ab[:, 1:2]

        def act(r):
            y = y_ref[:, r * pt:(r + 1) * pt].astype(jnp.float32)
            return jnp.maximum(a * y + b, 0.0)

        part = act(0)
        if pooling == "avg":
            for r in range(1, kc):
                part = part + act(r)
            part = part * inv_k

            @pl.when(kci == 0)
            def _():
                o_ref[...] = part

            @pl.when(kci > 0)
            def _():
                o_ref[...] = o_ref[...] + part
        else:
            for r in range(1, kc):
                part = jnp.maximum(part, act(r))

            @pl.when(kci == 0)
            def _():
                o_ref[...] = part

            @pl.when(kci > 0)
            def _():
                o_ref[...] = jnp.maximum(o_ref[...], part)

    return kernel


# ----------------------------------------------------------------------------
# Between-sweep scalar glue: fold per-block partial stats into a BN affine and
# the next layer's quantization parameters (tiny (C,)-sized JAX ops).
# ----------------------------------------------------------------------------
def _fold_stats(partials, gamma, beta, bn, eps, count):
    """relu(a*y + b) is per-channel monotone, so the activation min/max needed by
    the next Quantize follows exactly from the per-channel min/max of y."""
    tot_sum = jnp.sum(partials[:, :, 0], axis=0)
    tot_sq = jnp.sum(partials[:, :, 1], axis=0)
    cmin = jnp.min(partials[:, :, 2], axis=0)
    cmax = jnp.max(partials[:, :, 3], axis=0)

    mean = tot_sum / count
    var = jnp.maximum(tot_sq / count - mean * mean, 0.0)   # one-pass biased batch var
    if bn:
        a = gamma * jax.lax.rsqrt(var + eps)
        b = beta - a * mean
    else:
        a = jnp.ones_like(mean)
        b = jnp.zeros_like(mean)

    lo = jnp.maximum(jnp.where(a >= 0, a * cmin, a * cmax) + b, 0.0)
    hi = jnp.maximum(jnp.where(a >= 0, a * cmax, a * cmin) + b, 0.0)
    s, z = _quant_params(jnp.min(lo), jnp.max(hi))

    ab = jnp.stack([a, b], axis=1).astype(jnp.float32)          # (C, 2)  VMEM
    sz = jnp.stack([1.0 / s, z]).astype(jnp.float32)            # (2,)    SMEM
    return ab, sz


# ----------------------------------------------------------------------------
# Module wrapper
# ----------------------------------------------------------------------------
class PointNetSAModulePallas:
    def __init__(self, M, radius, K, in_channels, mlp, group_all, bn=True,
                 pooling="max", use_xyz=True, key=None, eps=1e-5, max_cols=None):
        self.M = M
        self.radius = radius
        self.K = K
        self.in_channels = in_channels
        self.mlp = list(mlp)
        self.group_all = group_all
        self.bn = bn
        self.pooling = pooling
        self.use_xyz = use_xyz
        self.eps = eps
        self.max_cols = max_cols            # test/tuning override of the column cap

        if key is None:
            key = jax.random.PRNGKey(0)
        self.layers = []
        c_in = in_channels
        for c_out in self.mlp:
            key, kw = jax.random.split(key)
            bound = 1.0 / math.sqrt(c_in)          # Conv2d(1x1, bias=False) init
            w = jax.random.uniform(kw, (c_out, c_in), minval=-bound, maxval=bound,
                                   dtype=jnp.float32)
            # Weight quantization (Quantize.apply(weight)) hoisted to build time;
            # int8-range integers are exact in bf16 (the portable MXU dtype).
            s_w, z_w = _quant_params(jnp.min(w), jnp.max(w))
            w_q = jnp.round(w / s_w + z_w).astype(jnp.bfloat16)
            gamma = jnp.ones((c_out,), jnp.float32)    # BatchNorm2d default affine
            beta = jnp.zeros((c_out,), jnp.float32)
            self.layers.append((w_q, gamma, beta))
            c_in = c_out

    def __call__(self, xyz, points):
        if self.group_all:
            new_xyz, new_points, _, _ = sample_and_group_all(xyz, points, self.use_xyz)
        else:
            new_xyz, new_points, _, _ = sample_and_group(
                xyz, points, self.M, self.radius, self.K, self.use_xyz)
        return new_xyz, self._backbone_and_pool(new_points)

    # ------------------------------------------------------------------
    def _backbone_and_pool(self, new_points):
        B, Mm, Kk, Cin = new_points.shape
        assert self.layers[0][0].shape[1] == Cin
        BM = B * Mm
        assert BM > 0
        BM_pad = _round_up(BM, _LANE)
        R_pad = Kk * BM_pad
        count = float(BM * Kk)              # true BN batch-stat element count
        masked = BM != BM_pad
        # Every column block spans whole >=128-wide point tiles and there are
        # < 128 pad columns per k-slab, so each block always holds at least one
        # valid column and the +/-inf min/max sentinels can never reach the fold.
        assert BM_pad - BM < _LANE

        col_cap = self.max_cols if self.max_cols is not None else _COL_CAP
        vmem_budget = _VMEM_LIMIT_BYTES // 2

        npts = new_points.astype(jnp.float32)
        # channels-first, k-major columns: col = k * BM_pad + (b*M + m).  This is
        # the single wrapper-side relayout (raw grouped features only); every
        # intermediate slab is produced channels-first by the kernels.
        x = jnp.transpose(npts.reshape(BM, Kk, Cin), (2, 1, 0))   # (Cin, K, BM)
        x = jnp.pad(x, ((0, 0), (0, 0), (0, BM_pad - BM)))
        x = x.reshape(Cin, R_pad)

        pt_valid = (jnp.arange(BM_pad) < BM).astype(jnp.float32)  # per-point mask

        # Quantize params of the first layer input (true elements only)
        s0, z0 = _quant_params(jnp.min(npts), jnp.max(npts))
        sz = jnp.stack([1.0 / s0, z0]).astype(jnp.float32)
        ab = None

        y = x
        in_bytes = 4                        # first slab is f32, later ones bf16
        for li, (w_q, gamma, beta) in enumerate(self.layers):
            c_out, c_prev = w_q.shape
            apply_prev = li > 0

            bytes_per_col = 2 * (c_prev * in_bytes + c_out * 2) + 4
            PT, KC = _plan_cols(BM_pad, Kk, bytes_per_col, col_cap, vmem_budget)
            T = KC * PT
            n_jp = BM_pad // PT
            n_kc = Kk // KC
            n_steps = n_jp * n_kc

            col_map = lambda jp, kc, n=n_jp: (0, kc * n + jp)
            in_specs = [pl.BlockSpec((c_prev, T), col_map),
                        pl.BlockSpec((c_out, c_prev), lambda jp, kc: (0, 0))]
            args = [y, w_q]
            if apply_prev:
                in_specs.append(pl.BlockSpec((c_prev, 2), lambda jp, kc: (0, 0)))
                args.append(ab)
            in_specs.append(pl.BlockSpec(memory_space=pltpu.MemorySpace.SMEM))
            args.append(sz)
            if masked:
                if PT == BM_pad:
                    # block spans whole k-slabs: the pad pattern is identical for
                    # every block -> constant index map, DMA'd exactly once.
                    m_arr = jnp.tile(pt_valid, (KC,)).reshape(1, T)
                    m_spec = pl.BlockSpec((1, T), lambda jp, kc: (0, 0))
                else:
                    # block is a slice of one k-slab: mask index changes only with
                    # the slow point-tile axis -> re-DMA'd once per n_kc steps.
                    m_arr = pt_valid.reshape(1, BM_pad)
                    m_spec = pl.BlockSpec((1, PT), lambda jp, kc, : (0, jp))
                in_specs.append(m_spec)
                args.append(m_arr)

            y, st = pl.pallas_call(
                _make_layer_kernel(apply_prev, masked),
                grid=(n_jp, n_kc),
                in_specs=in_specs,
                out_specs=(pl.BlockSpec((c_out, T), col_map),
                           pl.BlockSpec((1, c_out, 4),
                                        lambda jp, kc, n=n_jp: (kc * n + jp, 0, 0))),
                out_shape=(jax.ShapeDtypeStruct((c_out, R_pad), jnp.bfloat16),
                           jax.ShapeDtypeStruct((n_steps, c_out, 4), jnp.float32)),
                compiler_params=pltpu.CompilerParams(
                    # Both axes independent; "parallel" shards across the
                    # TensorCores on multi-TC parts (the per-block stats make the
                    # cross-core reduction trivial in _fold_stats).
                    dimension_semantics=("parallel", "parallel"),
                    vmem_limit_bytes=_VMEM_LIMIT_BYTES),
            )(*args)

            ab, sz = _fold_stats(st, gamma, beta, self.bn, self.eps, count)
            in_bytes = 2                    # bf16 inter-layer slabs from here on

        # final sweep: last layer's BN + ReLU fused with the pool over K
        c_last = self.mlp[-1]
        bytes_per_col = c_last * 12         # bf16 in + f32 out, double-buffered
        PTp, KCp = _plan_cols(BM_pad, Kk, bytes_per_col, col_cap, vmem_budget,
                              kc_cap=16)
        n_jp_p = BM_pad // PTp
        n_kc_p = Kk // KCp

        pooled = pl.pallas_call(
            _make_pool_kernel(self.pooling, Kk, KCp, PTp),
            grid=(n_jp_p, n_kc_p),
            in_specs=[pl.BlockSpec((c_last, KCp * PTp),
                                   lambda jp, kc, n=n_jp_p: (0, kc * n + jp)),
                      pl.BlockSpec((c_last, 2), lambda jp, kc: (0, 0))],
            out_specs=pl.BlockSpec((c_last, PTp), lambda jp, kc: (0, jp)),
            out_shape=jax.ShapeDtypeStruct((c_last, BM_pad), jnp.float32),
            compiler_params=pltpu.CompilerParams(
                dimension_semantics=("parallel", "arbitrary"),
                vmem_limit_bytes=_VMEM_LIMIT_BYTES),
        )(y, ab)

        out = pooled[:, :BM].T.reshape(B, Mm, c_last)   # == torch (B, M, mlp[-1])
        return out


# ----------------------------------------------------------------------------
# Plain-JAX mirror of the torch NCHW backbone for the numerical self-check.
# It reproduces the kernels' deliberate numerical policy: bf16 inter-layer
# slabs, one-pass batch variance, and BN/Quantize statistics taken from the f32
# pre-cast activations.
# ----------------------------------------------------------------------------
def _reference_forward(new_points, layers, bn, pooling, eps):
    x = jnp.transpose(new_points.astype(jnp.float32), (0, 3, 2, 1))   # (B, C, K, M)
    s, z = _quant_params(jnp.min(x), jnp.max(x))
    inv_s = 1.0 / s
    for (w_q, gamma, beta) in layers:
        xq = jnp.round(x * inv_s + z)
        y = jnp.einsum("oc,bckm->bokm", w_q.astype(jnp.float32), xq)
        mu = jnp.mean(y, axis=(0, 2, 3))
        var = jnp.maximum(jnp.mean(y * y, axis=(0, 2, 3)) - mu * mu, 0.0)
        if bn:
            a = gamma * jax.lax.rsqrt(var + eps)
            b = beta - a * mu
        else:
            a = jnp.ones_like(mu)
            b = jnp.zeros_like(mu)
        cmin = jnp.min(y, axis=(0, 2, 3))
        cmax = jnp.max(y, axis=(0, 2, 3))
        lo = jnp.maximum(jnp.where(a >= 0, a * cmin, a * cmax) + b, 0.0)
        hi = jnp.maximum(jnp.where(a >= 0, a * cmax, a * cmin) + b, 0.0)
        s, z = _quant_params(jnp.min(lo), jnp.max(hi))
        inv_s = 1.0 / s
        y = y.astype(jnp.bfloat16).astype(jnp.float32)      # bf16 inter-layer slab
        x = jnp.maximum(a.reshape(1, -1, 1, 1) * y + b.reshape(1, -1, 1, 1), 0.0)
    out = jnp.mean(x, axis=2) if pooling == "avg" else jnp.max(x, axis=2)
    return jnp.transpose(out, (0, 2, 1))                              # (B, M, C_last)


# ----------------------------------------------------------------------------
def _run_case(name, key, *, B, N, C_feat, M, radius, K, mlp, group_all,
              pooling, bn=True, use_xyz=True, max_cols=None):
    k_xyz, k_pts, k_param = jax.random.split(key, 3)
    xyz = jax.random.uniform(k_xyz, (B, N, 3), dtype=jnp.float32)
    points = jax.random.normal(k_pts, (B, N, C_feat), dtype=jnp.float32)
    in_channels = 3 + C_feat if use_xyz else C_feat

    module = PointNetSAModulePallas(M=M, radius=radius, K=K,
                                    in_channels=in_channels, mlp=mlp,
                                    group_all=group_all, bn=bn, pooling=pooling,
                                    use_xyz=use_xyz, key=k_param,
                                    max_cols=max_cols)
    fwd = jax.jit(lambda a, b: module(a, b))
    new_xyz, new_points_out = fwd(xyz, points)
    jax.block_until_ready((new_xyz, new_points_out))

    m_out = 1 if group_all else M
    assert new_xyz.shape == (B, m_out, 3), (name, new_xyz.shape)
    assert new_points_out.shape == (B, m_out, mlp[-1]), (name, new_points_out.shape)
    assert bool(jnp.all(jnp.isfinite(new_points_out))), name

    if group_all:
        _, grouped, _, _ = sample_and_group_all(xyz, points, use_xyz)
    else:
        _, grouped, _, _ = sample_and_group(xyz, points, M, radius, K, use_xyz)
    ref = _reference_forward(grouped, module.layers, module.bn, module.pooling,
                             module.eps)
    max_err = float(jnp.max(jnp.abs(new_points_out - ref)))
    assert bool(jnp.allclose(new_points_out, ref, rtol=2e-2, atol=2e-2)), (name, max_err)


if __name__ == "__main__":
    root = jax.random.PRNGKey(0)
    k1, k2, k3 = jax.random.split(root, 3)
    # Case 1: pad columns present (B*M=32 < 128) -> masked stats path, max pool.
    _run_case("masked_max", k1, B=2, N=64, C_feat=4, M=16, radius=0.5, K=8,
              mlp=[16, 32], group_all=False, pooling="max")
    # Case 2: B*M is a lane multiple (128) -> unmasked fast path, avg pool,
    # with the column cap shrunk to force multi-step grids / stat folding.
    _run_case("dense_avg", k2, B=4, N=64, C_feat=4, M=32, radius=0.5, K=8,
              mlp=[8, 16], group_all=False, pooling="avg", max_cols=256)
    # Case 3: B*M=192 with a 128-column cap -> point-tiled (regime-B) masked
    # path with accumulation over K grid steps in the pool.
    _run_case("tiled_max", k3, B=2, N=128, C_feat=4, M=96, radius=0.5, K=8,
              mlp=[8, 16], group_all=False, pooling="max", max_cols=128)
    print("KERNEL_OK")
</pallas_src>

<mosaic_0001>
module attributes {stable_mosaic.version = 11 : i64} {
  func.func @kernel(%arg0: i32, %arg1: i32, %arg2: memref<7x1024xf32, #tpu.memory_space<vmem>>, %arg3: memref<16x7xbf16, #tpu.memory_space<vmem>>, %arg4: memref<2xf32, #tpu.memory_space<smem>>, %arg5: memref<1x1024xf32, #tpu.memory_space<vmem>>, %arg6: memref<16x1024xbf16, #tpu.memory_space<vmem>>, %arg7: memref<1x16x4xf32, #tpu.memory_space<vmem>>) attributes {dimension_semantics = [#tpu.dimension_semantics<parallel>, #tpu.dimension_semantics<parallel>], iteration_bounds = array<i64: 1, 1>, scalar_prefetch = 0 : i64, scratch_operands = 0 : i64, tpu.core_type = #tpu.core_type<tc>, window_params = [{transform_indices = @transform_0, window_bounds = array<i64: 7, 1024>}, {pipeline_mode = #tpu.pipeline_mode<synchronous>, transform_indices = @transform_1, window_bounds = array<i64: 16, 7>}, {transform_indices = @transform_2, window_bounds = array<i64: 2>}, {pipeline_mode = #tpu.pipeline_mode<synchronous>, transform_indices = @transform_3, window_bounds = array<i64: 1, 1024>}, {transform_indices = @transform_4, window_bounds = array<i64: 16, 1024>}, {transform_indices = @transform_5, window_bounds = array<i64: 1, 16, 4>}]} {
    %c0 = arith.constant 0 : index
    %c0_0 = arith.constant 0 : index
    %0 = vector.load %arg2[%c0, %c0_0] : memref<7x1024xf32, #tpu.memory_space<vmem>>, vector<7x1024xf32>
    %c0_1 = arith.constant 0 : index
    %1 = memref.load %arg4[%c0_1] : memref<2xf32, #tpu.memory_space<smem>>
    %2 = vector.broadcast %1 : f32 to vector<7x1024xf32>
    %3 = arith.mulf %0, %2 : vector<7x1024xf32>
    %c1 = arith.constant 1 : index
    %4 = memref.load %arg4[%c1] : memref<2xf32, #tpu.memory_space<smem>>
    %5 = vector.broadcast %4 : f32 to vector<7x1024xf32>
    %6 = arith.addf %3, %5 : vector<7x1024xf32>
    %7 = math.roundeven %6 : vector<7x1024xf32>
    %c0_2 = arith.constant 0 : index
    %c0_3 = arith.constant 0 : index
    %8 = vector.load %arg3[%c0_2, %c0_3] : memref<16x7xbf16, #tpu.memory_space<vmem>>, vector<16x7xbf16>
    %9 = arith.truncf %7 : vector<7x1024xf32> to vector<7x1024xbf16>
    %cst = arith.constant dense<0.000000e+00> : vector<16x1024xf32>
    %10 = tpu.matmul %8, %9, %cst {dimension_numbers = #tpu.dot_dimension_numbers<[1], [0], [0], [1], [0, 0, 1, 1], [], []>} : vector<16x7xbf16>, vector<7x1024xbf16>, vector<16x1024xf32> -> vector<16x1024xf32>
    %11 = arith.truncf %10 : vector<16x1024xf32> to vector<16x1024xbf16>
    %c0_4 = arith.constant 0 : index
    %c0_5 = arith.constant 0 : index
    %12 = vector.load %arg6[%c0_4, %c0_5] : memref<16x1024xbf16, #tpu.memory_space<vmem>>, vector<16x1024xbf16>
    tpu.vector_store %arg6[%c0_4, %c0_5], %11 {strides = array<i32>} : memref<16x1024xbf16, #tpu.memory_space<vmem>>, vector<16x1024xbf16>,
    %c0_6 = arith.constant 0 : index
    %c0_7 = arith.constant 0 : index
    %13 = vector.load %arg5[%c0_6, %c0_7] : memref<1x1024xf32, #tpu.memory_space<vmem>>, vector<1x1024xf32>
    %14 = vector.broadcast %13 : vector<1x1024xf32> to vector<16x1024xf32>
    %15 = arith.mulf %10, %14 : vector<16x1024xf32>
    %cst_8 = arith.constant dense<0.000000e+00> : vector<16xf32>
    %16 = vector.multi_reduction <add>, %15, %cst_8 [1] : vector<16x1024xf32> to vector<16xf32>
    %17 = vector.shape_cast %16 : vector<16xf32> to vector<16x1xf32>
    %18 = arith.mulf %15, %15 : vector<16x1024xf32>
    %cst_9 = arith.constant dense<0.000000e+00> : vector<16xf32>
    %19 = vector.multi_reduction <add>, %18, %cst_9 [1] : vector<16x1024xf32> to vector<16xf32>
    %20 = vector.shape_cast %19 : vector<16xf32> to vector<16x1xf32>
    %cst_10 = arith.constant 5.000000e-01 : f32
    %21 = vector.broadcast %cst_10 : f32 to vector<1x1024xf32>
    %22 = arith.cmpf ogt, %13, %21 : vector<1x1024xf32>
    %cst_11 = arith.constant 0x7F800000 : f32
    %23 = vector.shape_cast %22 : vector<1x1024xi1> to vector<1x1024xi1>
    %24 = vector.broadcast %23 : vector<1x1024xi1> to vector<16x1024xi1>
    %25 = vector.broadcast %cst_11 : f32 to vector<16x1024xf32>
    %26 = arith.select %24, %10, %25 : vector<16x1024xi1>, vector<16x1024xf32>
    %cst_12 = arith.constant dense<0x7F800000> : vector<16xf32>
    %27 = vector.multi_reduction <minimumf>, %26, %cst_12 [1] : vector<16x1024xf32> to vector<16xf32>
    %28 = vector.shape_cast %27 : vector<16xf32> to vector<16x1xf32>
    %cst_13 = arith.constant 0xFF800000 : f32
    %29 = vector.shape_cast %22 : vector<1x1024xi1> to vector<1x1024xi1>
    %30 = vector.broadcast %29 : vector<1x1024xi1> to vector<16x1024xi1>
    %31 = vector.broadcast %cst_13 : f32 to vector<16x1024xf32>
    %32 = arith.select %30, %10, %31 : vector<16x1024xi1>, vector<16x1024xf32>
    %cst_14 = arith.constant dense<0xFF800000> : vector<16xf32>
    %33 = vector.multi_reduction <maximumf>, %32, %cst_14 [1] : vector<16x1024xf32> to vector<16xf32>
    %34 = vector.shape_cast %33 : vector<16xf32> to vector<16x1xf32>
    %35 = tpu.concatenate %17, %20, %28, %34 in 1 : vector<16x1xf32>, vector<16x1xf32>, vector<16x1xf32>, vector<16x1xf32> -> vector<16x4xf32>
    %c0_15 = arith.constant 0 : index
    %c0_16 = arith.constant 0 : index
    %c0_17 = arith.constant 0 : index
    %36 = vector.load %arg7[%c0_15, %c0_16, %c0_17] : memref<1x16x4xf32, #tpu.memory_space<vmem>>, vector<1x16x4xf32>
    %37 = vector.shape_cast %36 : vector<1x16x4xf32> to vector<16x4xf32>
    %38 = vector.shape_cast %35 : vector<16x4xf32> to vector<1x16x4xf32>
    tpu.vector_store %arg7[%c0_15, %c0_16, %c0_17], %38 {strides = array<i32>} : memref<1x16x4xf32, #tpu.memory_space<vmem>>, vector<1x16x4xf32>,
    return
  }
  func.func @transform_0(%arg0: i32, %arg1: i32) -> (i32, i32) {
    %c1_i32 = arith.constant 1 : i32
    %0 = arith.muli %arg1, %c1_i32 : i32
    %1 = arith.addi %0, %arg0 : i32
    %c0_i32 = arith.constant 0 : i32
    %c0_i32_0 = arith.constant 0 : i32
    return %c0_i32, %1 : i32, i32
  }
  func.func @transform_1(%arg0: i32, %arg1: i32) -> (i32, i32) {
    %c0_i32 = arith.constant 0 : i32
    %c0_i32_0 = arith.constant 0 : i32
    %c0_i32_1 = arith.constant 0 : i32
    return %c0_i32, %c0_i32_0 : i32, i32
  }
  func.func @transform_2(%arg0: i32, %arg1: i32) -> i32 {
    %c0_i32 = arith.constant 0 : i32
    %c0_i32_0 = arith.constant 0 : i32
    return %c0_i32 : i32
  }
  func.func @transform_3(%arg0: i32, %arg1: i32) -> (i32, i32) {
    %c0_i32 = arith.constant 0 : i32
    %c0_i32_0 = arith.constant 0 : i32
    %c0_i32_1 = arith.constant 0 : i32
    return %c0_i32, %c0_i32_0 : i32, i32
  }
  func.func @transform_4(%arg0: i32, %arg1: i32) -> (i32, i32) {
    %c1_i32 = arith.constant 1 : i32
    %0 = arith.muli %arg1, %c1_i32 : i32
    %1 = arith.addi %0, %arg0 : i32
    %c0_i32 = arith.constant 0 : i32
    %c0_i32_0 = arith.constant 0 : i32
    return %c0_i32, %1 : i32, i32
  }
  func.func @transform_5(%arg0: i32, %arg1: i32) -> (i32, i32, i32) {
    %c1_i32 = arith.constant 1 : i32
    %0 = arith.muli %arg1, %c1_i32 : i32
    %1 = arith.addi %0, %arg0 : i32
    %c0_i32 = arith.constant 0 : i32
    %c0_i32_0 = arith.constant 0 : i32
    %c0_i32_1 = arith.constant 0 : i32
    return %1, %c0_i32, %c0_i32_0 : i32, i32, i32
  }
}

module attributes {stable_mosaic.version = 11 : i64} {
  func.func @kernel(%arg0: i32, %arg1: i32, %arg2: memref<16x1024xbf16, #tpu.memory_space<vmem>>, %arg3: memref<32x16xbf16, #tpu.memory_space<vmem>>, %arg4: memref<16x2xf32, #tpu.memory_space<vmem>>, %arg5: memref<2xf32, #tpu.memory_space<smem>>, %arg6: memref<1x1024xf32, #tpu.memory_space<vmem>>, %arg7: memref<32x1024xbf16, #tpu.memory_space<vmem>>, %arg8: memref<1x32x4xf32, #tpu.memory_space<vmem>>) attributes {dimension_semantics = [#tpu.dimension_semantics<parallel>, #tpu.dimension_semantics<parallel>], iteration_bounds = array<i64: 1, 1>, scalar_prefetch = 0 : i64, scratch_operands = 0 : i64, tpu.core_type = #tpu.core_type<tc>, window_params = [{transform_indices = @transform_0, window_bounds = array<i64: 16, 1024>}, {pipeline_mode = #tpu.pipeline_mode<synchronous>, transform_indices = @transform_1, window_bounds = array<i64: 32, 16>}, {pipeline_mode = #tpu.pipeline_mode<synchronous>, transform_indices = @transform_2, window_bounds = array<i64: 16, 2>}, {transform_indices = @transform_3, window_bounds = array<i64: 2>}, {pipeline_mode = #tpu.pipeline_mode<synchronous>, transform_indices = @transform_4, window_bounds = array<i64: 1, 1024>}, {transform_indices = @transform_5, window_bounds = array<i64: 32, 1024>}, {transform_indices = @transform_6, window_bounds = array<i64: 1, 32, 4>}]} {
    %c0 = arith.constant 0 : index
    %c0_0 = arith.constant 0 : index
    %0 = vector.load %arg2[%c0, %c0_0] : memref<16x1024xbf16, #tpu.memory_space<vmem>>, vector<16x1024xbf16>
    %1 = arith.extf %0 : vector<16x1024xbf16> to vector<16x1024xf32>
    %c0_1 = arith.constant 0 : index
    %c0_2 = arith.constant 0 : index
    %2 = vector.load %arg4[%c0_1, %c0_2] : memref<16x2xf32, #tpu.memory_space<vmem>>, vector<16x2xf32>
    %3 = vector.extract_strided_slice %2 {offsets = [0, 0], sizes = [16, 1], strides = [1, 1]} : vector<16x2xf32> to vector<16x1xf32>
    %4 = vector.broadcast %3 : vector<16x1xf32> to vector<16x1024xf32>
    %5 = arith.mulf %4, %1 : vector<16x1024xf32>
    %6 = vector.extract_strided_slice %2 {offsets = [0, 1], sizes = [16, 1], strides = [1, 1]} : vector<16x2xf32> to vector<16x1xf32>
    %7 = vector.broadcast %6 : vector<16x1xf32> to vector<16x1024xf32>
    %8 = arith.addf %5, %7 : vector<16x1024xf32>
    %cst = arith.constant 0.000000e+00 : f32
    %9 = vector.broadcast %cst : f32 to vector<16x1024xf32>
    %10 = arith.maximumf %8, %9 : vector<16x1024xf32>
    %c0_3 = arith.constant 0 : index
    %11 = memref.load %arg5[%c0_3] : memref<2xf32, #tpu.memory_space<smem>>
    %12 = vector.broadcast %11 : f32 to vector<16x1024xf32>
    %13 = arith.mulf %10, %12 : vector<16x1024xf32>
    %c1 = arith.constant 1 : index
    %14 = memref.load %arg5[%c1] : memref<2xf32, #tpu.memory_space<smem>>
    %15 = vector.broadcast %14 : f32 to vector<16x1024xf32>
    %16 = arith.addf %13, %15 : vector<16x1024xf32>
    %17 = math.roundeven %16 : vector<16x1024xf32>
    %c0_4 = arith.constant 0 : index
    %c0_5 = arith.constant 0 : index
    %18 = vector.load %arg3[%c0_4, %c0_5] : memref<32x16xbf16, #tpu.memory_space<vmem>>, vector<32x16xbf16>
    %19 = arith.truncf %17 : vector<16x1024xf32> to vector<16x1024xbf16>
    %cst_6 = arith.constant dense<0.000000e+00> : vector<32x1024xf32>
    %20 = tpu.matmul %18, %19, %cst_6 {dimension_numbers = #tpu.dot_dimension_numbers<[1], [0], [0], [1], [0, 0, 1, 1], [], []>} : vector<32x16xbf16>, vector<16x1024xbf16>, vector<32x1024xf32> -> vector<32x1024xf32>
    %21 = arith.truncf %20 : vector<32x1024xf32> to vector<32x1024xbf16>
    %c0_7 = arith.constant 0 : index
    %c0_8 = arith.constant 0 : index
    %22 = vector.load %arg7[%c0_7, %c0_8] : memref<32x1024xbf16, #tpu.memory_space<vmem>>, vector<32x1024xbf16>
    tpu.vector_store %arg7[%c0_7, %c0_8], %21 {strides = array<i32>} : memref<32x1024xbf16, #tpu.memory_space<vmem>>, vector<32x1024xbf16>,
    %c0_9 = arith.constant 0 : index
    %c0_10 = arith.constant 0 : index
    %23 = vector.load %arg6[%c0_9, %c0_10] : memref<1x1024xf32, #tpu.memory_space<vmem>>, vector<1x1024xf32>
    %24 = vector.broadcast %23 : vector<1x1024xf32> to vector<32x1024xf32>
    %25 = arith.mulf %20, %24 : vector<32x1024xf32>
    %cst_11 = arith.constant dense<0.000000e+00> : vector<32xf32>
    %26 = vector.multi_reduction <add>, %25, %cst_11 [1] : vector<32x1024xf32> to vector<32xf32>
    %27 = vector.shape_cast %26 : vector<32xf32> to vector<32x1xf32>
    %28 = arith.mulf %25, %25 : vector<32x1024xf32>
    %cst_12 = arith.constant dense<0.000000e+00> : vector<32xf32>
    %29 = vector.multi_reduction <add>, %28, %cst_12 [1] : vector<32x1024xf32> to vector<32xf32>
    %30 = vector.shape_cast %29 : vector<32xf32> to vector<32x1xf32>
    %cst_13 = arith.constant 5.000000e-01 : f32
    %31 = vector.broadcast %cst_13 : f32 to vector<1x1024xf32>
    %32 = arith.cmpf ogt, %23, %31 : vector<1x1024xf32>
    %cst_14 = arith.constant 0x7F800000 : f32
    %33 = vector.shape_cast %32 : vector<1x1024xi1> to vector<1x1024xi1>
    %34 = vector.broadcast %33 : vector<1x1024xi1> to vector<32x1024xi1>
    %35 = vector.broadcast %cst_14 : f32 to vector<32x1024xf32>
    %36 = arith.select %34, %20, %35 : vector<32x1024xi1>, vector<32x1024xf32>
    %cst_15 = arith.constant dense<0x7F800000> : vector<32xf32>
    %37 = vector.multi_reduction <minimumf>, %36, %cst_15 [1] : vector<32x1024xf32> to vector<32xf32>
    %38 = vector.shape_cast %37 : vector<32xf32> to vector<32x1xf32>
    %cst_16 = arith.constant 0xFF800000 : f32
    %39 = vector.shape_cast %32 : vector<1x1024xi1> to vector<1x1024xi1>
    %40 = vector.broadcast %39 : vector<1x1024xi1> to vector<32x1024xi1>
    %41 = vector.broadcast %cst_16 : f32 to vector<32x1024xf32>
    %42 = arith.select %40, %20, %41 : vector<32x1024xi1>, vector<32x1024xf32>
    %cst_17 = arith.constant dense<0xFF800000> : vector<32xf32>
    %43 = vector.multi_reduction <maximumf>, %42, %cst_17 [1] : vector<32x1024xf32> to vector<32xf32>
    %44 = vector.shape_cast %43 : vector<32xf32> to vector<32x1xf32>
    %45 = tpu.concatenate %27, %30, %38, %44 in 1 : vector<32x1xf32>, vector<32x1xf32>, vector<32x1xf32>, vector<32x1xf32> -> vector<32x4xf32>
    %c0_18 = arith.constant 0 : index
    %c0_19 = arith.constant 0 : index
    %c0_20 = arith.constant 0 : index
    %46 = vector.load %arg8[%c0_18, %c0_19, %c0_20] : memref<1x32x4xf32, #tpu.memory_space<vmem>>, vector<1x32x4xf32>
    %47 = vector.shape_cast %46 : vector<1x32x4xf32> to vector<32x4xf32>
    %48 = vector.shape_cast %45 : vector<32x4xf32> to vector<1x32x4xf32>
    tpu.vector_store %arg8[%c0_18, %c0_19, %c0_20], %48 {strides = array<i32>} : memref<1x32x4xf32, #tpu.memory_space<vmem>>, vector<1x32x4xf32>,
    return
  }
  func.func @transform_0(%arg0: i32, %arg1: i32) -> (i32, i32) {
    %c1_i32 = arith.constant 1 : i32
    %0 = arith.muli %arg1, %c1_i32 : i32
    %1 = arith.addi %0, %arg0 : i32
    %c0_i32 = arith.constant 0 : i32
    %c0_i32_0 = arith.constant 0 : i32
    return %c0_i32, %1 : i32, i32
  }
  func.func @transform_1(%arg0: i32, %arg1: i32) -> (i32, i32) {
    %c0_i32 = arith.constant 0 : i32
    %c0_i32_0 = arith.constant 0 : i32
    %c0_i32_1 = arith.constant 0 : i32
    return %c0_i32, %c0_i32_0 : i32, i32
  }
  func.func @transform_2(%arg0: i32, %arg1: i32) -> (i32, i32) {
    %c0_i32 = arith.constant 0 : i32
    %c0_i32_0 = arith.constant 0 : i32
    %c0_i32_1 = arith.constant 0 : i32
    return %c0_i32, %c0_i32_0 : i32, i32
  }
  func.func @transform_3(%arg0: i32, %arg1: i32) -> i32 {
    %c0_i32 = arith.constant 0 : i32
    %c0_i32_0 = arith.constant 0 : i32
    return %c0_i32 : i32
  }
  func.func @transform_4(%arg0: i32, %arg1: i32) -> (i32, i32) {
    %c0_i32 = arith.constant 0 : i32
    %c0_i32_0 = arith.constant 0 : i32
    %c0_i32_1 = arith.constant 0 : i32
    return %c0_i32, %c0_i32_0 : i32, i32
  }
  func.func @transform_5(%arg0: i32, %arg1: i32) -> (i32, i32) {
    %c1_i32 = arith.constant 1 : i32
    %0 = arith.muli %arg1, %c1_i32 : i32
    %1 = arith.addi %0, %arg0 : i32
    %c0_i32 = arith.constant 0 : i32
    %c0_i32_0 = arith.constant 0 : i32
    return %c0_i32, %1 : i32, i32
  }
  func.func @transform_6(%arg0: i32, %arg1: i32) -> (i32, i32, i32) {
    %c1_i32 = arith.constant 1 : i32
    %0 = arith.muli %arg1, %c1_i32 : i32
    %1 = arith.addi %0, %arg0 : i32
    %c0_i32 = arith.constant 0 : i32
    %c0_i32_0 = arith.constant 0 : i32
    %c0_i32_1 = arith.constant 0 : i32
    return %1, %c0_i32, %c0_i32_0 : i32, i32, i32
  }
}

module attributes {stable_mosaic.version = 11 : i64} {
  func.func @kernel(%arg0: i32, %arg1: i32, %arg2: memref<32x1024xbf16, #tpu.memory_space<vmem>>, %arg3: memref<32x2xf32, #tpu.memory_space<vmem>>, %arg4: memref<32x128xf32, #tpu.memory_space<vmem>>) attributes {dimension_semantics = [#tpu.dimension_semantics<parallel>, #tpu.dimension_semantics<arbitrary>], iteration_bounds = array<i64: 1, 1>, scalar_prefetch = 0 : i64, scratch_operands = 0 : i64, tpu.core_type = #tpu.core_type<tc>, window_params = [{transform_indices = @transform_0, window_bounds = array<i64: 32, 1024>}, {pipeline_mode = #tpu.pipeline_mode<synchronous>, transform_indices = @transform_1, window_bounds = array<i64: 32, 2>}, {transform_indices = @transform_2, window_bounds = array<i64: 32, 128>}]} {
    %c0 = arith.constant 0 : index
    %c0_0 = arith.constant 0 : index
    %0 = vector.load %arg3[%c0, %c0_0] : memref<32x2xf32, #tpu.memory_space<vmem>>, vector<32x2xf32>
    %1 = vector.extract_strided_slice %0 {offsets = [0, 0], sizes = [32, 1], strides = [1, 1]} : vector<32x2xf32> to vector<32x1xf32>
    %2 = vector.extract_strided_slice %0 {offsets = [0, 1], sizes = [32, 1], strides = [1, 1]} : vector<32x2xf32> to vector<32x1xf32>
    %c0_1 = arith.constant 0 : index
    %c0_2 = arith.constant 0 : index
    %3 = vector.load %arg2[%c0_1, %c0_2] : memref<32x1024xbf16, #tpu.memory_space<vmem>>, vector<32x128xbf16>
    %4 = arith.extf %3 : vector<32x128xbf16> to vector<32x128xf32>
    %5 = vector.broadcast %1 : vector<32x1xf32> to vector<32x128xf32>
    %6 = arith.mulf %5, %4 : vector<32x128xf32>
    %7 = vector.broadcast %2 : vector<32x1xf32> to vector<32x128xf32>
    %8 = arith.addf %6, %7 : vector<32x128xf32>
    %cst = arith.constant 0.000000e+00 : f32
    %9 = vector.broadcast %cst : f32 to vector<32x128xf32>
    %10 = arith.maximumf %8, %9 : vector<32x128xf32>
    %c0_3 = arith.constant 0 : index
    %c128 = arith.constant 128 : index
    %11 = vector.load %arg2[%c0_3, %c128] : memref<32x1024xbf16, #tpu.memory_space<vmem>>, vector<32x128xbf16>
    %12 = arith.extf %11 : vector<32x128xbf16> to vector<32x128xf32>
    %13 = vector.broadcast %1 : vector<32x1xf32> to vector<32x128xf32>
    %14 = arith.mulf %13, %12 : vector<32x128xf32>
    %15 = vector.broadcast %2 : vector<32x1xf32> to vector<32x128xf32>
    %16 = arith.addf %14, %15 : vector<32x128xf32>
    %cst_4 = arith.constant 0.000000e+00 : f32
    %17 = vector.broadcast %cst_4 : f32 to vector<32x128xf32>
    %18 = arith.maximumf %16, %17 : vector<32x128xf32>
    %19 = arith.maximumf %10, %18 : vector<32x128xf32>
    %c0_5 = arith.constant 0 : index
    %c256 = arith.constant 256 : index
    %20 = vector.load %arg2[%c0_5, %c256] : memref<32x1024xbf16, #tpu.memory_space<vmem>>, vector<32x128xbf16>
    %21 = arith.extf %20 : vector<32x128xbf16> to vector<32x128xf32>
    %22 = vector.broadcast %1 : vector<32x1xf32> to vector<32x128xf32>
    %23 = arith.mulf %22, %21 : vector<32x128xf32>
    %24 = vector.broadcast %2 : vector<32x1xf32> to vector<32x128xf32>
    %25 = arith.addf %23, %24 : vector<32x128xf32>
    %cst_6 = arith.constant 0.000000e+00 : f32
    %26 = vector.broadcast %cst_6 : f32 to vector<32x128xf32>
    %27 = arith.maximumf %25, %26 : vector<32x128xf32>
    %28 = arith.maximumf %19, %27 : vector<32x128xf32>
    %c0_7 = arith.constant 0 : index
    %c384 = arith.constant 384 : index
    %29 = vector.load %arg2[%c0_7, %c384] : memref<32x1024xbf16, #tpu.memory_space<vmem>>, vector<32x128xbf16>
    %30 = arith.extf %29 : vector<32x128xbf16> to vector<32x128xf32>
    %31 = vector.broadcast %1 : vector<32x1xf32> to vector<32x128xf32>
    %32 = arith.mulf %31, %30 : vector<32x128xf32>
    %33 = vector.broadcast %2 : vector<32x1xf32> to vector<32x128xf32>
    %34 = arith.addf %32, %33 : vector<32x128xf32>
    %cst_8 = arith.constant 0.000000e+00 : f32
    %35 = vector.broadcast %cst_8 : f32 to vector<32x128xf32>
    %36 = arith.maximumf %34, %35 : vector<32x128xf32>
    %37 = arith.maximumf %28, %36 : vector<32x128xf32>
    %c0_9 = arith.constant 0 : index
    %c512 = arith.constant 512 : index
    %38 = vector.load %arg2[%c0_9, %c512] : memref<32x1024xbf16, #tpu.memory_space<vmem>>, vector<32x128xbf16>
    %39 = arith.extf %38 : vector<32x128xbf16> to vector<32x128xf32>
    %40 = vector.broadcast %1 : vector<32x1xf32> to vector<32x128xf32>
    %41 = arith.mulf %40, %39 : vector<32x128xf32>
    %42 = vector.broadcast %2 : vector<32x1xf32> to vector<32x128xf32>
    %43 = arith.addf %41, %42 : vector<32x128xf32>
    %cst_10 = arith.constant 0.000000e+00 : f32
    %44 = vector.broadcast %cst_10 : f32 to vector<32x128xf32>
    %45 = arith.maximumf %43, %44 : vector<32x128xf32>
    %46 = arith.maximumf %37, %45 : vector<32x128xf32>
    %c0_11 = arith.constant 0 : index
    %c640 = arith.constant 640 : index
    %47 = vector.load %arg2[%c0_11, %c640] : memref<32x1024xbf16, #tpu.memory_space<vmem>>, vector<32x128xbf16>
    %48 = arith.extf %47 : vector<32x128xbf16> to vector<32x128xf32>
    %49 = vector.broadcast %1 : vector<32x1xf32> to vector<32x128xf32>
    %50 = arith.mulf %49, %48 : vector<32x128xf32>
    %51 = vector.broadcast %2 : vector<32x1xf32> to vector<32x128xf32>
    %52 = arith.addf %50, %51 : vector<32x128xf32>
    %cst_12 = arith.constant 0.000000e+00 : f32
    %53 = vector.broadcast %cst_12 : f32 to vector<32x128xf32>
    %54 = arith.maximumf %52, %53 : vector<32x128xf32>
    %55 = arith.maximumf %46, %54 : vector<32x128xf32>
    %c0_13 = arith.constant 0 : index
    %c768 = arith.constant 768 : index
    %56 = vector.load %arg2[%c0_13, %c768] : memref<32x1024xbf16, #tpu.memory_space<vmem>>, vector<32x128xbf16>
    %57 = arith.extf %56 : vector<32x128xbf16> to vector<32x128xf32>
    %58 = vector.broadcast %1 : vector<32x1xf32> to vector<32x128xf32>
    %59 = arith.mulf %58, %57 : vector<32x128xf32>
    %60 = vector.broadcast %2 : vector<32x1xf32> to vector<32x128xf32>
    %61 = arith.addf %59, %60 : vector<32x128xf32>
    %cst_14 = arith.constant 0.000000e+00 : f32
    %62 = vector.broadcast %cst_14 : f32 to vector<32x128xf32>
    %63 = arith.maximumf %61, %62 : vector<32x128xf32>
    %64 = arith.maximumf %55, %63 : vector<32x128xf32>
    %c0_15 = arith.constant 0 : index
    %c896 = arith.constant 896 : index
    %65 = vector.load %arg2[%c0_15, %c896] : memref<32x1024xbf16, #tpu.memory_space<vmem>>, vector<32x128xbf16>
    %66 = arith.extf %65 : vector<32x128xbf16> to vector<32x128xf32>
    %67 = vector.broadcast %1 : vector<32x1xf32> to vector<32x128xf32>
    %68 = arith.mulf %67, %66 : vector<32x128xf32>
    %69 = vector.broadcast %2 : vector<32x1xf32> to vector<32x128xf32>
    %70 = arith.addf %68, %69 : vector<32x128xf32>
    %cst_16 = arith.constant 0.000000e+00 : f32
    %71 = vector.broadcast %cst_16 : f32 to vector<32x128xf32>
    %72 = arith.maximumf %70, %71 : vector<32x128xf32>
    %73 = arith.maximumf %64, %72 : vector<32x128xf32>
    %c0_i32 = arith.constant 0 : i32
    %74 = arith.cmpi eq, %arg1, %c0_i32 : i32
    %75 = arith.extui %74 : i1 to i32
    %c0_i32_17 = arith.constant 0 : i32
    %76 = arith.cmpi ne, %75, %c0_i32_17 : i32
    scf.if %76 {
      %c0_20 = arith.constant 0 : index
      %c0_21 = arith.constant 0 : index
      %80 = vector.load %arg4[%c0_20, %c0_21] : memref<32x128xf32, #tpu.memory_space<vmem>>, vector<32x128xf32>
      tpu.vector_store %arg4[%c0_20, %c0_21], %73 {strides = array<i32>} : memref<32x128xf32, #tpu.memory_space<vmem>>, vector<32x128xf32>,
    } else {
    }
    %c0_i32_18 = arith.constant 0 : i32
    %77 = arith.cmpi sgt, %arg1, %c0_i32_18 : i32
    %78 = arith.extui %77 : i1 to i32
    %c0_i32_19 = arith.constant 0 : i32
    %79 = arith.cmpi ne, %78, %c0_i32_19 : i32
    scf.if %79 {
      %c0_20 = arith.constant 0 : index
      %c0_21 = arith.constant 0 : index
      %80 = vector.load %arg4[%c0_20, %c0_21] : memref<32x128xf32, #tpu.memory_space<vmem>>, vector<32x128xf32>
      %81 = arith.maximumf %80, %73 : vector<32x128xf32>
      %c0_22 = arith.constant 0 : index
      %c0_23 = arith.constant 0 : index
      %82 = vector.load %arg4[%c0_22, %c0_23] : memref<32x128xf32, #tpu.memory_space<vmem>>, vector<32x128xf32>
      tpu.vector_store %arg4[%c0_22, %c0_23], %81 {strides = array<i32>} : memref<32x128xf32, #tpu.memory_space<vmem>>, vector<32x128xf32>,
    } else {
    }
    return
  }
  func.func @transform_0(%arg0: i32, %arg1: i32) -> (i32, i32) {
    %c1_i32 = arith.constant 1 : i32
    %0 = arith.muli %arg1, %c1_i32 : i32
    %1 = arith.addi %0, %arg0 : i32
    %c0_i32 = arith.constant 0 : i32
    %c0_i32_0 = arith.constant 0 : i32
    return %c0_i32, %1 : i32, i32
  }
  func.func @transform_1(%arg0: i32, %arg1: i32) -> (i32, i32) {
    %c0_i32 = arith.constant 0 : i32
    %c0_i32_0 = arith.constant 0 : i32
    %c0_i32_1 = arith.constant 0 : i32
    return %c0_i32, %c0_i32_0 : i32, i32
  }
  func.func @transform_2(%arg0: i32, %arg1: i32) -> (i32, i32) {
    %c0_i32 = arith.constant 0 : i32
    %c0_i32_0 = arith.constant 0 : i32
    return %c0_i32, %arg0 : i32, i32
  }
}

</mosaic_0001>

<llo_original>
// kernel: custom-call.8
$region0: #{custom-call.8}
  %s0 = inlined_call_operand.vmem [shape: f32[2,64], index: 0, kind: output, shape index: {}]

// kernel: tile.13
$region0: #{tile.13}
  #allocation0 [shape = 's32[1]{0}', space=sflag, size = 0x4, scoped, tag = 'scoped memory for tile.13']
  %s0 = inlined_call_operand.vmem [shape: f32[128], index: 0, kind: input, shape index: {}]
  %s1 = inlined_call_operand.vmem [shape: f32[8,128], index: 1, kind: output, shape index: {}]
  // Predicated region
  $region2: #{tile.13} parent=0 // pred_check
    _
  $region3: #{tile.13} parent=0 // pred_check_branch
    %3 = sbr.rel (0) target = $region5
  $region4: #{tile.13} parent=0 // pred_region
    _
  $region5: #{tile.13} parent=0 // pred_fallthru
    _
  %v4 = vld [vmem:[%s0] ss:$0 sm:$0xff]
  %5 = vst [vmem:[%s1] sm:$0xff] %v4

// kernel: _lambda_.3
$region0: #{_lambda_.3}
  #allocation0 [shape = 'u32[]', space=smem, size = 0x4, offset = 0x4, fixed_abs, tag = 'smem constant byte address 0x4 - core index']
  #allocation1 [shape = 'u32[144,128]{1,0:T(1,128)}', space=vmem, size = 0x12000, scoped, tag = 'internal scratch']
  %s0 = inlined_call_operand.vmem [shape: f32[7,1024], index: 0, kind: input, shape index: {}]
  %s1 = inlined_call_operand.vmem [shape: bf16[16,7], index: 1, kind: input, shape index: {}]
  %s2 = inlined_call_operand.vmem [shape: f32[2], index: 2, kind: input, shape index: {}]
  %s3 = inlined_call_operand.vmem [shape: f32[1,1024], index: 3, kind: input, shape index: {}]
  %s4 = inlined_call_operand.vmem [shape: bf16[16,1024], index: 4, kind: output, shape index: {0}]
  %s5 = inlined_call_operand.vmem [shape: f32[1,16,4], index: 5, kind: output, shape index: {1}]
  %6 = xla_tuple %s4, %s5
  %s7 = sld [smem:[#allocation0]]
  $region38: #{_lambda_.3} parent=0
    _
  %s9 = ssub.s32 1, %s7
  %s10 = scalar_select 0, %s9, %s7
  $region1: #{_lambda_.3} parent=0
    #allocation2 [shape = 'u8[512]{0}', space=smem, size = 0x200, scoped, tag = 'input window, operand 2, single buffered']
    #allocation3 [shape = 's32[1]{0}', space=sflag, size = 0x4, scoped, tag = 'scoped memory for _lambda_.3']
    %11 = vsyncpa [#allocation3], 0
    // Predicated region
    $region2: #{_lambda_.3} parent=1 // pred_check
      _
    $region3: #{_lambda_.3} parent=1 // pred_check_branch
      %13 = sbr.rel (0) target = $region5
    $region4: #{_lambda_.3} parent=1 // pred_region
      %s14 = sadd.s32 0, 0
      %s15 = smul.u32 8, %s14
      %p16 = scmp.lt.s32.totalorder %s15, 7
      %s17 = scalar_select %p16, %s15, 7
      %s18 = smul.addr %s17, 8
      %s19 = scalar_lea.vmem %s0, %s18
      %s20 = sadd.s32 0, 0
      %s21 = smul.u32 8, %s20
    $region5: #{_lambda_.3} parent=1 // pred_fallthru
      _
    // Predicated region
    $region6: #{_lambda_.3} parent=1 // pred_check
      _
    $region7: #{_lambda_.3} parent=1 // pred_check_branch
      %23 = sbr.rel (0) target = $region9
    $region8: #{_lambda_.3} parent=1 // pred_region
      _
    $region9: #{_lambda_.3} parent=1 // pred_fallthru
      _
    // Predicated region
    $region10: #{_lambda_.3} parent=1 // pred_check
      _
    $region11: #{_lambda_.3} parent=1 // pred_check_branch
      %25 = sbr.rel (0) target = $region13
    $region12: #{_lambda_.3} parent=1 // pred_region
      %s27 = ssub.s32 16, 16
      %28 = vsyncadd [#allocation3], %s27
      %s30 = sshll.u32 %s2, 4
      %s31 = int_to_ptr.vmem [resolvable:$true] %s30
      %33 = dma.vmem_to_smem %s31, 16, [#allocation2], [#allocation3]
    $region13: #{_lambda_.3} parent=1 // pred_fallthru
      _
    // Predicated region
    $region14: #{_lambda_.3} parent=1 // pred_check
      _
    $region15: #{_lambda_.3} parent=1 // pred_check_branch
      %35 = sbr.rel (0) target = $region17
    $region16: #{_lambda_.3} parent=1 // pred_region
      _
    $region17: #{_lambda_.3} parent=1 // pred_fallthru
      _
    // Predicated region
    $region18: #{_lambda_.3} parent=1 // pred_check
      _
    $region19: #{_lambda_.3} parent=1 // pred_check_branch
      %37 = sbr.rel (0) target = $region21
    $region20: #{_lambda_.3} parent=1 // pred_region
      %38 = dma.done [#allocation3], 16
    $region21: #{_lambda_.3} parent=1 // pred_fallthru
      _
    %39 = sfence
    %s40 = sadd.s32 0, 0
    %s41 = smul.u32 8, %s40
    %p42 = scmp.lt.s32.totalorder %s41, 7
    %s43 = scalar_select %p42, %s41, 7
    %s44 = smul.addr %s43, 8
    %s45 = scalar_lea.vmem %s0, %s44
    %s46 = sadd.s32 0, 0
    %s47 = smul.u32 8, %s46
    %p48 = scmp.lt.s32.totalorder %s47, 7
    %s49 = scalar_select %p48, %s47, 7
    %s50 = smul.addr %s49, 4
    %s51 = scalar_lea.vmem %s4, %s50
    %s52 = sadd.s32 0, 0
    %p53 = scmp.lt.s32.totalorder %s52, 0
    %s54 = scalar_select %p53, %s52, 0
    %s55 = smul.addr %s54, 2
    %s56 = smul.addr %s55, 8
    %s57 = scalar_lea.vmem %s5, %s56
    %s58 = sadd.s32 0, 0
    %s59 = smul.u32 8, %s58
    %p60 = scmp.lt.s32.totalorder %s59, 7
    %s61 = scalar_select %p60, %s59, 7
    %s62 = smul.addr %s61, 8
    %s63 = scalar_lea.vmem %s0, %s62
    %s64 = sadd.s32 0, 0
    %s65 = smul.u32 8, %s64
    %s66 = sadd.s32 0, 0
    %s67 = smul.u32 8, %s66
    %p68 = scmp.lt.s32.totalorder %s67, 7
    %s69 = scalar_select %p68, %s67, 7
    %s70 = smul.addr %s69, 4
    %s71 = scalar_lea.vmem %s4, %s70
    %s72 = sadd.s32 0, 0
    %s73 = smul.u32 8, %s72
    %s74 = sadd.s32 0, 0
    %p75 = scmp.lt.s32.totalorder %s74, 0
    %s76 = scalar_select %p75, %s74, 0
    %s77 = smul.addr %s76, 2
    %s78 = smul.addr %s77, 8
    %s79 = scalar_lea.vmem %s5, %s78
    %s80 = sadd.s32 0, 0
    %v82 = vld [vmem:[%s63] sm:$0x7f]
    %v83 = vld [vmem:[%s63 + $0x8] sm:$0x7f]
    %v84 = vld [vmem:[%s63 + $0x10] sm:$0x7f]
    %v85 = vld [vmem:[%s63 + $0x18] sm:$0x7f]
    %v86 = vld [vmem:[%s63 + $0x20] sm:$0x7f]
    %v87 = vld [vmem:[%s63 + $0x28] sm:$0x7f]
    %v88 = vld [vmem:[%s63 + $0x30] sm:$0x7f]
    %v89 = vld [vmem:[%s63 + $0x38] sm:$0x7f]
    %s90 = sld [smem:[#allocation2]]
    %v91 = vstv %s90
    %v92 = vmul.f32 %v82, %v91
    %v93 = vmul.f32 %v83, %v91
    %v94 = vmul.f32 %v84, %v91
    %v95 = vmul.f32 %v85, %v91
    %v96 = vmul.f32 %v86, %v91
    %v97 = vmul.f32 %v87, %v91
    %v98 = vmul.f32 %v88, %v91
    %v99 = vmul.f32 %v89, %v91
    %s100 = sld [smem:[#allocation2 + $0x1]]
    %v101 = vstv %s100
    %v102 = vadd.f32 %v92, %v101
    %v103 = vadd.f32 %v93, %v101
    %v104 = vadd.f32 %v94, %v101
    %v105 = vadd.f32 %v95, %v101
    %v106 = vadd.f32 %v96, %v101
    %v107 = vadd.f32 %v97, %v101
    %v108 = vadd.f32 %v98, %v101
    %v109 = vadd.f32 %v99, %v101
    %v110 = vround.ne.pseudo %v102
    %v111 = vround.ne.pseudo %v103
    %v112 = vround.ne.pseudo %v104
    %v113 = vround.ne.pseudo %v105
    %v114 = vround.ne.pseudo %v106
    %v115 = vround.ne.pseudo %v107
    %v116 = vround.ne.pseudo %v108
    %v117 = vround.ne.pseudo %v109
    %v118 = vld [vmem:[%s1] sm:$0xf]
    %v119 = vld [vmem:[%s1 + $0x4] sm:$0xf]
    %v120 = vpack.c.bf16 %v110, %v110
    %v121 = vpack.c.bf16 %v111, %v111
    %v122 = vpack.c.bf16 %v112, %v112
    %v123 = vpack.c.bf16 %v113, %v113
    %v124 = vpack.c.bf16 %v114, %v114
    %v125 = vpack.c.bf16 %v115, %v115
    %v126 = vpack.c.bf16 %v116, %v116
    %v127 = vpack.c.bf16 %v117, %v117
    %v130 = vunpack.c.l.b16 %v118
    %v131 = vunpack.c.l.b16 %v119
    %v132 = vpack.c.b16 %v131, %v130
    %vm133 = vcmask 56320
    %v135 = vsel %vm133, %v132, 0
    %vm137 = vcmask 1042432
    %vm138 = vcmask 1043456
    %v139 = vsel %vm137, 4294967295, 65535
    %v140 = vsel %vm138, %v139, 0
    %v142 = vand.u32 %v120, %v140
    %v145 = vand.u32 %v121, %v140
    %v148 = vand.u32 %v122, %v140
    %v151 = vand.u32 %v123, %v140
    %v154 = vand.u32 %v124, %v140
    %v157 = vand.u32 %v125, %v140
    %v160 = vand.u32 %v126, %v140
    %v163 = vand.u32 %v127, %v140
    %165 = vmatprep.subr.bf16.mxu0 0
    %166 = vmatpush1.bf16.msra.mxu0 0
    %167 = vmatprep.subr.bf16.mxu0 0
    %168 = vmatpush1.bf16.msra.mxu0 0
    %169 = vmatprep.subr.bf16.mxu0 0
    %170 = vmatpush1.bf16.msra.mxu0 0
    %171 = vmatprep.subr.bf16.mxu0 0
    %172 = vmatpush1.bf16.msra.mxu0 0
    %173 = vmatprep.subr.bf16.mxu0 0
    %174 = vmatpush1.bf16.msra.mxu0 0
    %175 = vmatprep.subr.bf16.mxu0 0
    %176 = vmatpush1.bf16.msra.mxu0 0
    %177 = vmatprep.subr.bf16.mxu0 0
    %178 = vmatpush1.bf16.msra.mxu0 0
    %179 = vmatprep.subr.bf16.mxu0 %v145
    %180 = vmatpush1.bf16.msra.mxu0 %v142
    %181 = vmatprep.subr.bf16.mxu0 0
    %182 = vmatpush2.bf16.msra.mxu0 0
    %183 = vmatprep.subr.bf16.mxu0 0
    %184 = vmatpush2.bf16.msra.mxu0 0
    %185 = vmatprep.subr.bf16.mxu0 0
    %186 = vmatpush2.bf16.msra.mxu0 0
    %187 = vmatprep.subr.bf16.mxu0 0
    %188 = vmatpush2.bf16.msra.mxu0 0
    %189 = vmatprep.subr.bf16.mxu0 0
    %190 = vmatpush2.bf16.msra.mxu0 0
    %191 = vmatprep.subr.bf16.mxu0 0
    %192 = vmatpush2.bf16.msra.mxu0 0
    %193 = vmatprep.subr.bf16.mxu0 0
    %194 = vmatpush2.bf16.msra.mxu0 0
    %195 = vmatprep.subr.bf16.mxu0 0
    %196 = vmatpush2.bf16.msra.mxu0 0
    %197 = vmatprep.mubr.bf16.mxu0 0
    %198 = vmatmul.mubr.bf16.gmra.mxu0 %v135
    %v199 = vpop.f32.mrf.mxu0
    %v200 = vadd.f32 0.0, %v199
    %v201 = vpop.f32.mrf.mxu0
    %v202 = vadd.f32 0.0, %v201
    %v203 = vpop.f32.mrf.mxu0
    %v204 = vadd.f32 0.0, %v203
    %v205 = vpop.f32.mrf.mxu0
    %v206 = vadd.f32 0.0, %v205
    %207 = vdwg.mxu0
    %208 = vmatprep.subr.bf16.mxu0 0
    %209 = vmatpush1.bf16.msra.mxu0 0
    %210 = vmatprep.subr.bf16.mxu0 0
    %211 = vmatpush1.bf16.msra.mxu0 0
    %212 = vmatprep.subr.bf16.mxu0 0
    %213 = vmatpush1.bf16.msra.mxu0 0
    %214 = vmatprep.subr.bf16.mxu0 0
    %215 = vmatpush1.bf16.msra.mxu0 0
    %216 = vmatprep.subr.bf16.mxu0 0
    %217 = vmatpush1.bf16.msra.mxu0 0
    %218 = vmatprep.subr.bf16.mxu0 0
    %219 = vmatpush1.bf16.msra.mxu0 0
    %220 = vmatprep.subr.bf16.mxu0 0
    %221 = vmatpush1.bf16.msra.mxu0 0
    %222 = vmatprep.subr.bf16.mxu0 %v151
    %223 = vmatpush1.bf16.msra.mxu0 %v148
    %224 = vmatprep.subr.bf16.mxu0 0
    %225 = vmatpush2.bf16.msra.mxu0 0
    %226 = vmatprep.subr.bf16.mxu0 0
    %227 = vmatpush2.bf16.msra.mxu0 0
    %228 = vmatprep.subr.bf16.mxu0 0
    %229 = vmatpush2.bf16.msra.mxu0 0
    %230 = vmatprep.subr.bf16.mxu0 0
    %231 = vmatpush2.bf16.msra.mxu0 0
    %232 = vmatprep.subr.bf16.mxu0 0
    %233 = vmatpush2.bf16.msra.mxu0 0
    %234 = vmatprep.subr.bf16.mxu0 0
    %235 = vmatpush2.bf16.msra.mxu0 0
    %236 = vmatprep.subr.bf16.mxu0 0
    %237 = vmatpush2.bf16.msra.mxu0 0
    %238 = vmatprep.subr.bf16.mxu0 0
    %239 = vmatpush2.bf16.msra.mxu0 0
    %240 = vmatprep.mubr.bf16.mxu0 0
    %241 = vmatmul.mubr.bf16.gmra.mxu0 %v135
    %v242 = vpop.f32.mrf.mxu0
    %v243 = vadd.f32 0.0, %v242
    %v244 = vpop.f32.mrf.mxu0
    %v245 = vadd.f32 0.0, %v244
    %v246 = vpop.f32.mrf.mxu0
    %v247 = vadd.f32 0.0, %v246
    %v248 = vpop.f32.mrf.mxu0
    %v249 = vadd.f32 0.0, %v248
    %250 = vdwg.mxu0
    %251 = vmatprep.subr.bf16.mxu0 0
    %252 = vmatpush1.bf16.msra.mxu0 0
    %253 = vmatprep.subr.bf16.mxu0 0
    %254 = vmatpush1.bf16.msra.mxu0 0
    %255 = vmatprep.subr.bf16.mxu0 0
    %256 = vmatpush1.bf16.msra.mxu0 0
    %257 = vmatprep.subr.bf16.mxu0 0
    %258 = vmatpush1.bf16.msra.mxu0 0
    %259 = vmatprep.subr.bf16.mxu0 0
    %260 = vmatpush1.bf16.msra.mxu0 0
    %261 = vmatprep.subr.bf16.mxu0 0
    %262 = vmatpush1.bf16.msra.mxu0 0
    %263 = vmatprep.subr.bf16.mxu0 0
    %264 = vmatpush1.bf16.msra.mxu0 0
    %265 = vmatprep.subr.bf16.mxu0 %v157
    %266 = vmatpush1.bf16.msra.mxu0 %v154
    %267 = vmatprep.subr.bf16.mxu0 0
    %268 = vmatpush2.bf16.msra.mxu0 0
    %269 = vmatprep.subr.bf16.mxu0 0
    %270 = vmatpush2.bf16.msra.mxu0 0
    %271 = vmatprep.subr.bf16.mxu0 0
    %272 = vmatpush2.bf16.msra.mxu0 0
    %273 = vmatprep.subr.bf16.mxu0 0
    %274 = vmatpush2.bf16.msra.mxu0 0
    %275 = vmatprep.subr.bf16.mxu0 0
    %276 = vmatpush2.bf16.msra.mxu0 0
    %277 = vmatprep.subr.bf16.mxu0 0
    %278 = vmatpush2.bf16.msra.mxu0 0
    %279 = vmatprep.subr.bf16.mxu0 0
    %280 = vmatpush2.bf16.msra.mxu0 0
    %281 = vmatprep.subr.bf16.mxu0 0
    %282 = vmatpush2.bf16.msra.mxu0 0
    %283 = vmatprep.mubr.bf16.mxu0 0
    %284 = vmatmul.mubr.bf16.gmra.mxu0 %v135
    %v285 = vpop.f32.mrf.mxu0
    %v286 = vadd.f32 0.0, %v285
    %v287 = vpop.f32.mrf.mxu0
    %v288 = vadd.f32 0.0, %v287
    %v289 = vpop.f32.mrf.mxu0
    %v290 = vadd.f32 0.0, %v289
    %v291 = vpop.f32.mrf.mxu0
    %v292 = vadd.f32 0.0, %v291
    %293 = vdwg.mxu0
    %294 = vmatprep.subr.bf16.mxu0 0
    %295 = vmatpush1.bf16.msra.mxu0 0
    %296 = vmatprep.subr.bf16.mxu0 0
    %297 = vmatpush1.bf16.msra.mxu0 0
    %298 = vmatprep.subr.bf16.mxu0 0
    %299 = vmatpush1.bf16.msra.mxu0 0
    %300 = vmatprep.subr.bf16.mxu0 0
    %301 = vmatpush1.bf16.msra.mxu0 0
    %302 = vmatprep.subr.bf16.mxu0 0
    %303 = vmatpush1.bf16.msra.mxu0 0
    %304 = vmatprep.subr.bf16.mxu0 0
    %305 = vmatpush1.bf16.msra.mxu0 0
    %306 = vmatprep.subr.bf16.mxu0 0
    %307 = vmatpush1.bf16.msra.mxu0 0
    %308 = vmatprep.subr.bf16.mxu0 %v163
    %309 = vmatpush1.bf16.msra.mxu0 %v160
    %310 = vmatprep.subr.bf16.mxu0 0
    %311 = vmatpush2.bf16.msra.mxu0 0
    %312 = vmatprep.subr.bf16.mxu0 0
    %313 = vmatpush2.bf16.msra.mxu0 0
    %314 = vmatprep.subr.bf16.mxu0 0
    %315 = vmatpush2.bf16.msra.mxu0 0
    %316 = vmatprep.subr.bf16.mxu0 0
    %317 = vmatpush2.bf16.msra.mxu0 0
    %318 = vmatprep.subr.bf16.mxu0 0
    %319 = vmatpush2.bf16.msra.mxu0 0
    %320 = vmatprep.subr.bf16.mxu0 0
    %321 = vmatpush2.bf16.msra.mxu0 0
    %322 = vmatprep.subr.bf16.mxu0 0
    %323 = vmatpush2.bf16.msra.mxu0 0
    %324 = vmatprep.subr.bf16.mxu0 0
    %325 = vmatpush2.bf16.msra.mxu0 0
    %326 = vmatprep.mubr.bf16.mxu0 0
    %327 = vmatmul.mubr.bf16.gmra.mxu0 %v135
    %v328 = vpop.f32.mrf.mxu0
    %v329 = vadd.f32 0.0, %v328
    %v330 = vpop.f32.mrf.mxu0
    %v331 = vadd.f32 0.0, %v330
    %v332 = vpop.f32.mrf.mxu0
    %v333 = vadd.f32 0.0, %v332
    %v334 = vpop.f32.mrf.mxu0
    %v335 = vadd.f32 0.0, %v334
    %336 = vdwg.mxu0
    %v337 = vpack.c.bf16 %v204, %v200
    %v338 = vpack.c.bf16 %v206, %v202
    %v339 = vpack.c.bf16 %v247, %v243
    %v340 = vpack.c.bf16 %v249, %v245
    %v341 = vpack.c.bf16 %v290, %v286
    %v342 = vpack.c.bf16 %v292, %v288
    %v343 = vpack.c.bf16 %v333, %v329
    %v344 = vpack.c.bf16 %v335, %v331
    %v353 = vunpack.c.l.b16 %v337
    %v354 = vunpack.c.l.b16 %v338
    %v355 = vunpack.c.l.b16 %v339
    %v356 = vunpack.c.l.b16 %v340
    %v357 = vunpack.c.l.b16 %v341
    %v358 = vunpack.c.l.b16 %v342
    %v359 = vunpack.c.l.b16 %v343
    %v360 = vunpack.c.l.b16 %v344
    %v361 = vunpack.c.h.b16 %v337
    %v362 = vunpack.c.h.b16 %v338
    %v363 = vunpack.c.h.b16 %v339
    %v364 = vunpack.c.h.b16 %v340
    %v365 = vunpack.c.h.b16 %v341
    %v366 = vunpack.c.h.b16 %v342
    %v367 = vunpack.c.h.b16 %v343
    %v368 = vunpack.c.h.b16 %v344
    %v369 = vpack.c.b16 %v354, %v353
    %v370 = vpack.c.b16 %v356, %v355
    %v371 = vpack.c.b16 %v358, %v357
    %v372 = vpack.c.b16 %v360, %v359
    %v373 = vpack.c.b16 %v362, %v361
    %v374 = vpack.c.b16 %v364, %v363
    %v375 = vpack.c.b16 %v366, %v365
    %v376 = vpack.c.b16 %v368, %v367
    %385 = vst [vmem:[%s71] sm:$0xff] %v369
    %386 = vst [vmem:[%s71 + $0x8] sm:$0xff] %v370
    %387 = vst [vmem:[%s71 + $0x10] sm:$0xff] %v371
    %388 = vst [vmem:[%s71 + $0x18] sm:$0xff] %v372
    %389 = vst [vmem:[%s71 + $0x20] sm:$0xff] %v373
    %390 = vst [vmem:[%s71 + $0x28] sm:$0xff] %v374
    %391 = vst [vmem:[%s71 + $0x30] sm:$0xff] %v375
    %392 = vst [vmem:[%s71 + $0x38] sm:$0xff] %v376
    %v393 = vld [vmem:[%s3] sm:$0xff]
    %v395 = vlaneseq
    %v396 = vshrl.u32 %v395, 7
    %v397 = vsub.s32 0, %v396
    %v398 = vrot.slane %v393, %v397
    %v399 = vlaneseq
    %v400 = vshrl.u32 %v399, 7
    %v401 = vsub.s32 1, %v400
    %v402 = vrot.slane %v393, %v401
    %v403 = vlaneseq
    %v404 = vshrl.u32 %v403, 7
    %v405 = vsub.s32 2, %v404
    %v406 = vrot.slane %v393, %v405
    %v407 = vlaneseq
    %v408 = vshrl.u32 %v407, 7
    %v409 = vsub.s32 3, %v408
    %v410 = vrot.slane %v393, %v409
    %v411 = vlaneseq
    %v412 = vshrl.u32 %v411, 7
    %v413 = vsub.s32 4, %v412
    %v414 = vrot.slane %v393, %v413
    %v415 = vlaneseq
    %v416 = vshrl.u32 %v415, 7
    %v417 = vsub.s32 5, %v416
    %v418 = vrot.slane %v393, %v417
    %v419 = vlaneseq
    %v420 = vshrl.u32 %v419, 7
    %v421 = vsub.s32 6, %v420
    %v422 = vrot.slane %v393, %v421
    %v423 = vlaneseq
    %v424 = vshrl.u32 %v423, 7
    %v425 = vsub.s32 7, %v424
    %v426 = vrot.slane %v393, %v425
    %v435 = vmul.f32 %v200, %v398
    %v436 = vmul.f32 %v202, %v402
    %v437 = vmul.f32 %v243, %v406
    %v438 = vmul.f32 %v245, %v410
    %v439 = vmul.f32 %v286, %v414
    %v440 = vmul.f32 %v288, %v418
    %v441 = vmul.f32 %v329, %v422
    %v442 = vmul.f32 %v331, %v426
    %v443 = vmul.f32 %v204, %v398
    %v444 = vmul.f32 %v206, %v402
    %v445 = vmul.f32 %v247, %v406
    %v446 = vmul.f32 %v249, %v410
    %v447 = vmul.f32 %v290, %v414
    %v448 = vmul.f32 %v292, %v418
    %v449 = vmul.f32 %v333, %v422
    %v450 = vmul.f32 %v335, %v426
    %v451 = vadd.f32 %v435, %v436
    %v452 = vadd.f32 %v451, %v437
    %v453 = vadd.f32 %v452, %v438
    %v454 = vadd.f32 %v453, %v439
    %v455 = vadd.f32 %v454, %v440
    %v456 = vadd.f32 %v455, %v441
    %v457 = vadd.f32 %v456, %v442
    %458 = vadd.xlane.f32.xlu0 %v457
    %v459 = vpop.xlane.xlu0 %458
    %v460 = vadd.f32 %v443, %v444
    %v461 = vadd.f32 %v460, %v445
    %v462 = vadd.f32 %v461, %v446
    %v463 = vadd.f32 %v462, %v447
    %v464 = vadd.f32 %v463, %v448
    %v465 = vadd.f32 %v464, %v449
    %v466 = vadd.f32 %v465, %v450
    %467 = vadd.xlane.f32.xlu0 %v466
    %v468 = vpop.xlane.xlu0 %467
    %v469 = vmul.f32 %v435, %v435
    %v470 = vmul.f32 %v436, %v436
    %v471 = vmul.f32 %v437, %v437
    %v472 = vmul.f32 %v438, %v438
    %v473 = vmul.f32 %v439, %v439
    %v474 = vmul.f32 %v440, %v440
    %v475 = vmul.f32 %v441, %v441
    %v476 = vmul.f32 %v442, %v442
    %v477 = vmul.f32 %v443, %v443
    %v478 = vmul.f32 %v444, %v444
    %v479 = vmul.f32 %v445, %v445
    %v480 = vmul.f32 %v446, %v446
    %v481 = vmul.f32 %v447, %v447
    %v482 = vmul.f32 %v448, %v448
    %v483 = vmul.f32 %v449, %v449
    %v484 = vmul.f32 %v450, %v450
    %v485 = vadd.f32 %v469, %v470
    %v486 = vadd.f32 %v485, %v471
    %v487 = vadd.f32 %v486, %v472
    %v488 = vadd.f32 %v487, %v473
    %v489 = vadd.f32 %v488, %v474
    %v490 = vadd.f32 %v489, %v475
    %v491 = vadd.f32 %v490, %v476
    %492 = vadd.xlane.f32.xlu0 %v491
    %v493 = vpop.xlane.xlu0 %492
    %v494 = vadd.f32 %v477, %v478
    %v495 = vadd.f32 %v494, %v479
    %v496 = vadd.f32 %v495, %v480
    %v497 = vadd.f32 %v496, %v481
    %v498 = vadd.f32 %v497, %v482
    %v499 = vadd.f32 %v498, %v483
    %v500 = vadd.f32 %v499, %v484
    %501 = vadd.xlane.f32.xlu0 %v500
    %v502 = vpop.xlane.xlu0 %501
    %vm503 = vcmp.gt.f32.partialorder %v393, 0.5
    %v504 = vsel %vm503, 1, 0
    %v505 = vlaneseq
    %v506 = vshrl.u32 %v505, 7
    %v507 = vsub.s32 0, %v506
    %v508 = vrot.slane %v504, %v507
    %v509 = vlaneseq
    %v510 = vshrl.u32 %v509, 7
    %v511 = vsub.s32 1, %v510
    %v512 = vrot.slane %v504, %v511
    %v513 = vlaneseq
    %v514 = vshrl.u32 %v513, 7
    %v515 = vsub.s32 2, %v514
    %v516 = vrot.slane %v504, %v515
    %v517 = vlaneseq
    %v518 = vshrl.u32 %v517, 7
    %v519 = vsub.s32 3, %v518
    %v520 = vrot.slane %v504, %v519
    %v521 = vlaneseq
    %v522 = vshrl.u32 %v521, 7
    %v523 = vsub.s32 4, %v522
    %v524 = vrot.slane %v504, %v523
    %v525 = vlaneseq
    %v526 = vshrl.u32 %v525, 7
    %v527 = vsub.s32 5, %v526
    %v528 = vrot.slane %v504, %v527
    %v529 = vlaneseq
    %v530 = vshrl.u32 %v529, 7
    %v531 = vsub.s32 6, %v530
    %v532 = vrot.slane %v504, %v531
    %v533 = vlaneseq
    %v534 = vshrl.u32 %v533, 7
    %v535 = vsub.s32 7, %v534
    %v536 = vrot.slane %v504, %v535
    %vm537 = vcmp.eq.s32.totalorder %v508, 1
    %vm538 = vcmp.eq.s32.totalorder %v512, 1
    %vm539 = vcmp.eq.s32.totalorder %v516, 1
    %vm540 = vcmp.eq.s32.totalorder %v520, 1
    %vm541 = vcmp.eq.s32.totalorder %v524, 1
    %vm542 = vcmp.eq.s32.totalorder %v528, 1
    %vm543 = vcmp.eq.s32.totalorder %v532, 1
    %vm544 = vcmp.eq.s32.totalorder %v536, 1
    %v545 = vsel %vm537, %v200, inf
    %v546 = vsel %vm538, %v202, inf
    %v547 = vsel %vm539, %v243, inf
    %v548 = vsel %vm540, %v245, inf
    %v549 = vsel %vm541, %v286, inf
    %v550 = vsel %vm542, %v288, inf
    %v551 = vsel %vm543, %v329, inf
    %v552 = vsel %vm544, %v331, inf
    %v553 = vsel %vm537, %v204, inf
    %v554 = vsel %vm538, %v206, inf
    %v555 = vsel %vm539, %v247, inf
    %v556 = vsel %vm540, %v249, inf
    %v557 = vsel %vm541, %v290, inf
    %v558 = vsel %vm542, %v292, inf
    %v559 = vsel %vm543, %v333, inf
    %v560 = vsel %vm544, %v335, inf
    %v561 = vmin.f32 %v545, %v547
    %v562 = vmin.f32 %v546, %v548
    %v563 = vmin.f32 %v561, %v549
    %v564 = vmin.f32 %v562, %v550
    %v565 = vmin.f32 %v563, %v551
    %v566 = vmin.f32 %v564, %v552
    %v567 = vmin.f32 %v565, %v566
    %568 = vmin.xlane.f32.xlu0 %v567
    %v569 = vpop.xlane.xlu0 %568
    %v570 = vmin.f32 %v553, %v555
    %v571 = vmin.f32 %v554, %v556
    %v572 = vmin.f32 %v570, %v557
    %v573 = vmin.f32 %v571, %v558
    %v574 = vmin.f32 %v572, %v559
    %v575 = vmin.f32 %v573, %v560
    %v576 = vmin.f32 %v574, %v575
    %577 = vmin.xlane.f32.xlu0 %v576
    %v578 = vpop.xlane.xlu0 %577
    %v579 = vsel %vm537, %v200, -inf
    %v580 = vsel %vm538, %v202, -inf
    %v581 = vsel %vm539, %v243, -inf
    %v582 = vsel %vm540, %v245, -inf
    %v583 = vsel %vm541, %v286, -inf
    %v584 = vsel %vm542, %v288, -inf
    %v585 = vsel %vm543, %v329, -inf
    %v586 = vsel %vm544, %v331, -inf
    %v587 = vsel %vm537, %v204, -inf
    %v588 = vsel %vm538, %v206, -inf
    %v589 = vsel %vm539, %v247, -inf
    %v590 = vsel %vm540, %v249, -inf
    %v591 = vsel %vm541, %v290, -inf
    %v592 = vsel %vm542, %v292, -inf
    %v593 = vsel %vm543, %v333, -inf
    %v594 = vsel %vm544, %v335, -inf
    %v595 = vmax.f32 %v579, %v581
    %v596 = vmax.f32 %v580, %v582
    %v597 = vmax.f32 %v595, %v583
    %v598 = vmax.f32 %v596, %v584
    %v599 = vmax.f32 %v597, %v585
    %v600 = vmax.f32 %v598, %v586
    %v601 = vmax.f32 %v599, %v600
    %602 = vmax.xlane.f32.xlu0 %v601
    %v603 = vpop.xlane.xlu0 %602
    %v604 = vmax.f32 %v587, %v589
    %v605 = vmax.f32 %v588, %v590
    %v606 = vmax.f32 %v604, %v591
    %v607 = vmax.f32 %v605, %v592
    %v608 = vmax.f32 %v606, %v593
    %v609 = vmax.f32 %v607, %v594
    %v610 = vmax.f32 %v608, %v609
    %611 = vmax.xlane.f32.xlu0 %v610
    %v612 = vpop.xlane.xlu0 %611
    %vm613 = vcmask 7168
    %v614 = vsel %vm613, %v459, %v493
    %v615 = vsel %vm613, %v468, %v502
    %vm616 = vcmask 15360
    %v617 = vsel %vm616, %v614, %v569
    %v618 = vsel %vm616, %v615, %v578
    %vm619 = vcmask 23552
    %v620 = vsel %vm619, %v617, %v603
    %v621 = vsel %vm619, %v618, %v612
    %vm622 = vcmask 31744
    %623 = vst.msk [vmem:[%s79] sm:$0xff] %vm622, %v620
    %624 = vst.msk [vmem:[%s79 + $0x8] sm:$0xff] %vm622, %v621
    %s625 = sadd.s32 0, 0
    %s626 = smul.u32 8, %s625
    %p627 = scmp.lt.s32.totalorder %s626, 7
    %s628 = scalar_select %p627, %s626, 7
    %s629 = smul.addr %s628, 4
    %s630 = scalar_lea.vmem %s4, %s629
    %s631 = sadd.s32 0, 0
    %p632 = scmp.lt.s32.totalorder %s631, 0
    %s633 = scalar_select %p632, %s631, 0
    %s634 = smul.addr %s633, 2
    %s635 = smul.addr %s634, 8
    %s636 = scalar_lea.vmem %s5, %s635
    // Predicated region
    $region22: #{_lambda_.3} parent=1 // pred_check
      _
    $region23: #{_lambda_.3} parent=1 // pred_check_branch
      %638 = sbr.rel (0) target = $region25
    $region24: #{_lambda_.3} parent=1 // pred_region
      %s639 = sadd.s32 0, 0
      %s640 = smul.u32 8, %s639
    $region25: #{_lambda_.3} parent=1 // pred_fallthru
      _
    // Predicated region
    $region26: #{_lambda_.3} parent=1 // pred_check
      _
    $region27: #{_lambda_.3} parent=1 // pred_check_branch
      %642 = sbr.rel (0) target = $region29
    $region28: #{_lambda_.3} parent=1 // pred_region
      %s643 = sadd.s32 0, 0
    $region29: #{_lambda_.3} parent=1 // pred_fallthru
      _
    // Predicated region
    $region30: #{_lambda_.3} parent=1 // pred_check
      _
    $region31: #{_lambda_.3} parent=1 // pred_check_branch
      %645 = sbr.rel (0) target = $region33
    $region32: #{_lambda_.3} parent=1 // pred_region
      %s646 = sadd.s32 0, 0
      %s647 = smul.u32 8, %s646
      %p648 = scmp.lt.s32.totalorder %s647, 7
      %s649 = scalar_select %p648, %s647, 7
      %s650 = smul.addr %s649, 4
      %s651 = scalar_lea.vmem %s4, %s650
    $region33: #{_lambda_.3} parent=1 // pred_fallthru
      _
    // Predicated region
    $region34: #{_lambda_.3} parent=1 // pred_check
      _
    $region35: #{_lambda_.3} parent=1 // pred_check_branch
      %653 = sbr.rel (0) target = $region37
    $region36: #{_lambda_.3} parent=1 // pred_region
      %s654 = sadd.s32 0, 0
      %p655 = scmp.lt.s32.totalorder %s654, 0
      %s656 = scalar_select %p655, %s654, 0
      %s657 = smul.addr %s656, 2
      %s658 = smul.addr %s657, 8
      %s659 = scalar_lea.vmem %s5, %s658
    $region37: #{_lambda_.3} parent=1 // pred_fallthru
      _
    %660 = vsyncpa [#allocation3], 1

// kernel: _lambda_.5
$region0: #{_lambda_.5}
  #allocation0 [shape = 'u32[]', space=smem, size = 0x4, offset = 0x4, fixed_abs, tag = 'smem constant byte address 0x4 - core index']
  #allocation1 [shape = 'u32[144,128]{1,0:T(1,128)}', space=vmem, size = 0x12000, scoped, tag = 'internal scratch']
  %s0 = inlined_call_operand.vmem [shape: bf16[32,1024], index: 0, kind: input, shape index: {}]
  %s1 = inlined_call_operand.vmem [shape: f32[32,2], index: 1, kind: input, shape index: {}]
  %s2 = inlined_call_operand.vmem [shape: f32[32,128], index: 2, kind: output, shape index: {}]
  %s3 = sld [smem:[#allocation0]]
  $region26: #{_lambda_.5} parent=0
    _
  %s5 = ssub.s32 1, %s3
  %s6 = scalar_select 0, %s5, %s3
  // Predicated region
  $region2: #{_lambda_.5} parent=0 // pred_check
    _
  $region3: #{_lambda_.5} parent=0 // pred_check_branch
    %8 = sbr.rel (0) target = $region5
  $region4: #{_lambda_.5} parent=0 // pred_region
    %s9 = sadd.s32 0, 0
    %s10 = smul.u32 8, %s9
    %p11 = scmp.lt.s32.totalorder %s10, 7
    %s12 = scalar_select %p11, %s10, 7
    %s13 = smul.addr %s12, 4
    %s14 = scalar_lea.vmem %s0, %s13
    %s15 = sadd.s32 0, 0
    %s16 = smul.u32 8, %s15
  $region5: #{_lambda_.5} parent=0 // pred_fallthru
    _
  // Predicated region
  $region6: #{_lambda_.5} parent=0 // pred_check
    _
  $region7: #{_lambda_.5} parent=0 // pred_check_branch
    %18 = sbr.rel (0) target = $region9
  $region8: #{_lambda_.5} parent=0 // pred_region
    _
  $region9: #{_lambda_.5} parent=0 // pred_fallthru
    _
  %s19 = sadd.s32 0, 0
  %s20 = smul.u32 8, %s19
  %p21 = scmp.lt.s32.totalorder %s20, 7
  %s22 = scalar_select %p21, %s20, 7
  %s23 = smul.addr %s22, 4
  %s24 = scalar_lea.vmem %s0, %s23
  %s25 = sadd.s32 0, 0
  %s26 = smul.u32 8, %s25
  %p27 = scmp.lt.s32.totalorder %s26, 7
  %s28 = scalar_select %p27, %s26, 7
  %s29 = smul.addr %s28, 4
  %s30 = scalar_lea.vmem %s0, %s29
  %s31 = sadd.s32 0, 0
  %s32 = smul.u32 8, %s31
  %v33 = vld [vmem:[%s1] sm:$0xff]
  %v34 = vld [vmem:[%s1 + $0x8] sm:$0xff]
  %v35 = vld [vmem:[%s1 + $0x10] sm:$0xff]
  %v36 = vld [vmem:[%s1 + $0x18] sm:$0xff]
  %v37 = vld [vmem:[%s30] sm:$0xf]
  %v38 = vld [vmem:[%s30 + $0x20] sm:$0xf]
  %v39 = vld [vmem:[%s30 + $0x40] sm:$0xf]
  %v40 = vld [vmem:[%s30 + $0x60] sm:$0xf]
  %v41 = vunpack.c.l.bf16 %v37
  %v42 = vunpack.c.l.bf16 %v38
  %v43 = vunpack.c.l.bf16 %v39
  %v44 = vunpack.c.l.bf16 %v40
  %46 = vset.pattern.permute.xlu0 0
  %47 = vperm.xlu0 %46, %v33
  %v48 = vpop.permute.xlu0 %47
  %51 = vset.pattern.permute.xlu0 0
  %52 = vperm.xlu0 %51, %v34
  %v53 = vpop.permute.xlu0 %52
  %56 = vset.pattern.permute.xlu0 0
  %57 = vperm.xlu0 %56, %v35
  %v58 = vpop.permute.xlu0 %57
  %61 = vset.pattern.permute.xlu0 0
  %62 = vperm.xlu0 %61, %v36
  %v63 = vpop.permute.xlu0 %62
  %v65 = vmul.f32 %v48, %v41
  %v66 = vmul.f32 %v53, %v42
  %v67 = vmul.f32 %v58, %v43
  %v68 = vmul.f32 %v63, %v44
  %69 = vset.pattern.permute.xlu0 1
  %70 = vperm.xlu0 %69, %v33
  %v71 = vpop.permute.xlu0 %70
  %73 = vset.pattern.permute.xlu0 1
  %74 = vperm.xlu0 %73, %v34
  %v75 = vpop.permute.xlu0 %74
  %77 = vset.pattern.permute.xlu0 1
  %78 = vperm.xlu0 %77, %v35
  %v79 = vpop.permute.xlu0 %78
  %81 = vset.pattern.permute.xlu0 1
  %82 = vperm.xlu0 %81, %v36
  %v83 = vpop.permute.xlu0 %82
  %v85 = vadd.f32 %v65, %v71
  %v86 = vadd.f32 %v66, %v75
  %v87 = vadd.f32 %v67, %v79
  %v88 = vadd.f32 %v68, %v83
  %v89 = vmax.f32 %v85, 0.0
  %v90 = vmax.f32 %v86, 0.0
  %v91 = vmax.f32 %v87, 0.0
  %v92 = vmax.f32 %v88, 0.0
  %v93 = vld [vmem:[%s30 + $0x4] sm:$0xf]
  %v94 = vld [vmem:[%s30 + $0x24] sm:$0xf]
  %v95 = vld [vmem:[%s30 + $0x44] sm:$0xf]
  %v96 = vld [vmem:[%s30 + $0x64] sm:$0xf]
  %v97 = vunpack.c.l.bf16 %v93
  %v98 = vunpack.c.l.bf16 %v94
  %v99 = vunpack.c.l.bf16 %v95
  %v100 = vunpack.c.l.bf16 %v96
  %v101 = vmul.f32 %v48, %v97
  %v102 = vmul.f32 %v53, %v98
  %v103 = vmul.f32 %v58, %v99
  %v104 = vmul.f32 %v63, %v100
  %v105 = vadd.f32 %v101, %v71
  %v106 = vadd.f32 %v102, %v75
  %v107 = vadd.f32 %v103, %v79
  %v108 = vadd.f32 %v104, %v83
  %v109 = vmax.f32 %v105, 0.0
  %v110 = vmax.f32 %v106, 0.0
  %v111 = vmax.f32 %v107, 0.0
  %v112 = vmax.f32 %v108, 0.0
  %v113 = vmax.f32 %v89, %v109
  %v114 = vmax.f32 %v90, %v110
  %v115 = vmax.f32 %v91, %v111
  %v116 = vmax.f32 %v92, %v112
  %v117 = vld [vmem:[%s30 + $0x8] sm:$0xf]
  %v118 = vld [vmem:[%s30 + $0x28] sm:$0xf]
  %v119 = vld [vmem:[%s30 + $0x48] sm:$0xf]
  %v120 = vld [vmem:[%s30 + $0x68] sm:$0xf]
  %v121 = vunpack.c.l.bf16 %v117
  %v122 = vunpack.c.l.bf16 %v118
  %v123 = vunpack.c.l.bf16 %v119
  %v124 = vunpack.c.l.bf16 %v120
  %v125 = vmul.f32 %v48, %v121
  %v126 = vmul.f32 %v53, %v122
  %v127 = vmul.f32 %v58, %v123
  %v128 = vmul.f32 %v63, %v124
  %v129 = vadd.f32 %v125, %v71
  %v130 = vadd.f32 %v126, %v75
  %v131 = vadd.f32 %v127, %v79
  %v132 = vadd.f32 %v128, %v83
  %v133 = vmax.f32 %v129, 0.0
  %v134 = vmax.f32 %v130, 0.0
  %v135 = vmax.f32 %v131, 0.0
  %v136 = vmax.f32 %v132, 0.0
  %v137 = vmax.f32 %v113, %v133
  %v138 = vmax.f32 %v114, %v134
  %v139 = vmax.f32 %v115, %v135
  %v140 = vmax.f32 %v116, %v136
  %v141 = vld [vmem:[%s30 + $0xc] sm:$0xf]
  %v142 = vld [vmem:[%s30 + $0x2c] sm:$0xf]
  %v143 = vld [vmem:[%s30 + $0x4c] sm:$0xf]
  %v144 = vld [vmem:[%s30 + $0x6c] sm:$0xf]
  %v145 = vunpack.c.l.bf16 %v141
  %v146 = vunpack.c.l.bf16 %v142
  %v147 = vunpack.c.l.bf16 %v143
  %v148 = vunpack.c.l.bf16 %v144
  %v149 = vmul.f32 %v48, %v145
  %v150 = vmul.f32 %v53, %v146
  %v151 = vmul.f32 %v58, %v147
  %v152 = vmul.f32 %v63, %v148
  %v153 = vadd.f32 %v149, %v71
  %v154 = vadd.f32 %v150, %v75
  %v155 = vadd.f32 %v151, %v79
  %v156 = vadd.f32 %v152, %v83
  %v157 = vmax.f32 %v153, 0.0
  %v158 = vmax.f32 %v154, 0.0
  %v159 = vmax.f32 %v155, 0.0
  %v160 = vmax.f32 %v156, 0.0
  %v161 = vmax.f32 %v137, %v157
  %v162 = vmax.f32 %v138, %v158
  %v163 = vmax.f32 %v139, %v159
  %v164 = vmax.f32 %v140, %v160
  %v165 = vld [vmem:[%s30 + $0x10] sm:$0xf]
  %v166 = vld [vmem:[%s30 + $0x30] sm:$0xf]
  %v167 = vld [vmem:[%s30 + $0x50] sm:$0xf]
  %v168 = vld [vmem:[%s30 + $0x70] sm:$0xf]
  %v169 = vunpack.c.l.bf16 %v165
  %v170 = vunpack.c.l.bf16 %v166
  %v171 = vunpack.c.l.bf16 %v167
  %v172 = vunpack.c.l.bf16 %v168
  %v173 = vmul.f32 %v48, %v169
  %v174 = vmul.f32 %v53, %v170
  %v175 = vmul.f32 %v58, %v171
  %v176 = vmul.f32 %v63, %v172
  %v177 = vadd.f32 %v173, %v71
  %v178 = vadd.f32 %v174, %v75
  %v179 = vadd.f32 %v175, %v79
  %v180 = vadd.f32 %v176, %v83
  %v181 = vmax.f32 %v177, 0.0
  %v182 = vmax.f32 %v178, 0.0
  %v183 = vmax.f32 %v179, 0.0
  %v184 = vmax.f32 %v180, 0.0
  %v185 = vmax.f32 %v161, %v181
  %v186 = vmax.f32 %v162, %v182
  %v187 = vmax.f32 %v163, %v183
  %v188 = vmax.f32 %v164, %v184
  %v189 = vld [vmem:[%s30 + $0x14] sm:$0xf]
  %v190 = vld [vmem:[%s30 + $0x34] sm:$0xf]
  %v191 = vld [vmem:[%s30 + $0x54] sm:$0xf]
  %v192 = vld [vmem:[%s30 + $0x74] sm:$0xf]
  %v193 = vunpack.c.l.bf16 %v189
  %v194 = vunpack.c.l.bf16 %v190
  %v195 = vunpack.c.l.bf16 %v191
  %v196 = vunpack.c.l.bf16 %v192
  %v197 = vmul.f32 %v48, %v193
  %v198 = vmul.f32 %v53, %v194
  %v199 = vmul.f32 %v58, %v195
  %v200 = vmul.f32 %v63, %v196
  %v201 = vadd.f32 %v197, %v71
  %v202 = vadd.f32 %v198, %v75
  %v203 = vadd.f32 %v199, %v79
  %v204 = vadd.f32 %v200, %v83
  %v205 = vmax.f32 %v201, 0.0
  %v206 = vmax.f32 %v202, 0.0
  %v207 = vmax.f32 %v203, 0.0
  %v208 = vmax.f32 %v204, 0.0
  %v209 = vmax.f32 %v185, %v205
  %v210 = vmax.f32 %v186, %v206
  %v211 = vmax.f32 %v187, %v207
  %v212 = vmax.f32 %v188, %v208
  %v213 = vld [vmem:[%s30 + $0x18] sm:$0xf]
  %v214 = vld [vmem:[%s30 + $0x38] sm:$0xf]
  %v215 = vld [vmem:[%s30 + $0x58] sm:$0xf]
  %v216 = vld [vmem:[%s30 + $0x78] sm:$0xf]
  %v217 = vunpack.c.l.bf16 %v213
  %v218 = vunpack.c.l.bf16 %v214
  %v219 = vunpack.c.l.bf16 %v215
  %v220 = vunpack.c.l.bf16 %v216
  %v221 = vmul.f32 %v48, %v217
  %v222 = vmul.f32 %v53, %v218
  %v223 = vmul.f32 %v58, %v219
  %v224 = vmul.f32 %v63, %v220
  %v225 = vadd.f32 %v221, %v71
  %v226 = vadd.f32 %v222, %v75
  %v227 = vadd.f32 %v223, %v79
  %v228 = vadd.f32 %v224, %v83
  %v229 = vmax.f32 %v225, 0.0
  %v230 = vmax.f32 %v226, 0.0
  %v231 = vmax.f32 %v227, 0.0
  %v232 = vmax.f32 %v228, 0.0
  %v233 = vmax.f32 %v209, %v229
  %v234 = vmax.f32 %v210, %v230
  %v235 = vmax.f32 %v211, %v231
  %v236 = vmax.f32 %v212, %v232
  %v237 = vld [vmem:[%s30 + $0x1c] sm:$0xf]
  %v238 = vld [vmem:[%s30 + $0x3c] sm:$0xf]
  %v239 = vld [vmem:[%s30 + $0x5c] sm:$0xf]
  %v240 = vld [vmem:[%s30 + $0x7c] sm:$0xf]
  %v241 = vunpack.c.l.bf16 %v237
  %v242 = vunpack.c.l.bf16 %v238
  %v243 = vunpack.c.l.bf16 %v239
  %v244 = vunpack.c.l.bf16 %v240
  %v245 = vmul.f32 %v48, %v241
  %v246 = vmul.f32 %v53, %v242
  %v247 = vmul.f32 %v58, %v243
  %v248 = vmul.f32 %v63, %v244
  %v249 = vadd.f32 %v245, %v71
  %v250 = vadd.f32 %v246, %v75
  %v251 = vadd.f32 %v247, %v79
  %v252 = vadd.f32 %v248, %v83
  %v253 = vmax.f32 %v249, 0.0
  %v254 = vmax.f32 %v250, 0.0
  %v255 = vmax.f32 %v251, 0.0
  %v256 = vmax.f32 %v252, 0.0
  %v257 = vmax.f32 %v233, %v253
  %v258 = vmax.f32 %v234, %v254
  %v259 = vmax.f32 %v235, %v255
  %v260 = vmax.f32 %v236, %v256
  %p261 = scmp.eq.s32.totalorder 0, 0
  // Predicated region
  $region10: #{_lambda_.5} parent=0 // pred_check
    %p262 = pneg %p261
  $region11: #{_lambda_.5} parent=0 // pred_check_branch
    %264 = sbr.rel (%p262) target = $region13
  $region12: #{_lambda_.5} parent=0 // pred_region
    %265 = vst [vmem:[%s2] sm:$0xff] %v257
    %266 = vst [vmem:[%s2 + $0x8] sm:$0xff] %v258
    %267 = vst [vmem:[%s2 + $0x10] sm:$0xff] %v259
    %268 = vst [vmem:[%s2 + $0x18] sm:$0xff] %v260
  $region13: #{_lambda_.5} parent=0 // pred_fallthru
    _
  %p269 = scmp.gt.s32.totalorder 0, 0
  // Predicated region
  $region14: #{_lambda_.5} parent=0 // pred_check
    %p270 = pneg %p269
  $region15: #{_lambda_.5} parent=0 // pred_check_branch
    %272 = sbr.rel (%p270) target = $region17
  $region16: #{_lambda_.5} parent=0 // pred_region
    %v273 = vld [vmem:[%s2] sm:$0xff]
    %v274 = vld [vmem:[%s2 + $0x8] sm:$0xff]
    %v275 = vld [vmem:[%s2 + $0x10] sm:$0xff]
    %v276 = vld [vmem:[%s2 + $0x18] sm:$0xff]
    %v277 = vmax.f32 %v273, %v257
    %v278 = vmax.f32 %v274, %v258
    %v279 = vmax.f32 %v275, %v259
    %v280 = vmax.f32 %v276, %v260
    %281 = vst [vmem:[%s2] sm:$0xff] %v277
    %282 = vst [vmem:[%s2 + $0x8] sm:$0xff] %v278
    %283 = vst [vmem:[%s2 + $0x10] sm:$0xff] %v279
    %284 = vst [vmem:[%s2 + $0x18] sm:$0xff] %v280
  $region17: #{_lambda_.5} parent=0 // pred_fallthru
    _
  // Predicated region
  $region18: #{_lambda_.5} parent=0 // pred_check
    _
  $region19: #{_lambda_.5} parent=0 // pred_check_branch
    %286 = sbr.rel (0) target = $region21
  $region20: #{_lambda_.5} parent=0 // pred_region
    _
  $region21: #{_lambda_.5} parent=0 // pred_fallthru
    _
  // Predicated region
  $region22: #{_lambda_.5} parent=0 // pred_check
    _
  $region23: #{_lambda_.5} parent=0 // pred_check_branch
    %288 = sbr.rel (0) target = $region25
  $region24: #{_lambda_.5} parent=0 // pred_region
    _
  $region25: #{_lambda_.5} parent=0 // pred_fallthru
    _

// kernel: _lambda_.4
$region0: #{_lambda_.4}
  #allocation0 [shape = 'u32[]', space=smem, size = 0x4, offset = 0x4, fixed_abs, tag = 'smem constant byte address 0x4 - core index']
  #allocation1 [shape = 'u32[144,128]{1,0:T(1,128)}', space=vmem, size = 0x12000, scoped, tag = 'internal scratch']
  %s0 = inlined_call_operand.vmem [shape: bf16[16,1024], index: 0, kind: input, shape index: {}]
  %s1 = inlined_call_operand.vmem [shape: bf16[32,16], index: 1, kind: input, shape index: {}]
  %s2 = inlined_call_operand.vmem [shape: f32[16,2], index: 2, kind: input, shape index: {}]
  %s3 = inlined_call_operand.vmem [shape: f32[2], index: 3, kind: input, shape index: {}]
  %s4 = inlined_call_operand.vmem [shape: f32[1,1024], index: 4, kind: input, shape index: {}]
  %s5 = inlined_call_operand.vmem [shape: bf16[32,1024], index: 5, kind: output, shape index: {0}]
  %s6 = inlined_call_operand.vmem [shape: f32[1,32,4], index: 6, kind: output, shape index: {1}]
  %7 = xla_tuple %s5, %s6
  %s8 = sld [smem:[#allocation0]]
  $region42: #{_lambda_.4} parent=0
    _
  %s10 = ssub.s32 1, %s8
  %s11 = scalar_select 0, %s10, %s8
  $region1: #{_lambda_.4} parent=0
    #allocation2 [shape = 'u8[512]{0}', space=smem, size = 0x200, scoped, tag = 'input window, operand 3, single buffered']
    #allocation3 [shape = 's32[1]{0}', space=sflag, size = 0x4, scoped, tag = 'scoped memory for _lambda_.4']
    %12 = vsyncpa [#allocation3], 0
    // Predicated region
    $region2: #{_lambda_.4} parent=1 // pred_check
      _
    $region3: #{_lambda_.4} parent=1 // pred_check_branch
      %14 = sbr.rel (0) target = $region5
    $region4: #{_lambda_.4} parent=1 // pred_region
      %s15 = sadd.s32 0, 0
      %s16 = smul.u32 8, %s15
      %p17 = scmp.lt.s32.totalorder %s16, 7
      %s18 = scalar_select %p17, %s16, 7
      %s19 = smul.addr %s18, 4
      %s20 = scalar_lea.vmem %s0, %s19
      %s21 = sadd.s32 0, 0
      %s22 = smul.u32 8, %s21
    $region5: #{_lambda_.4} parent=1 // pred_fallthru
      _
    // Predicated region
    $region6: #{_lambda_.4} parent=1 // pred_check
      _
    $region7: #{_lambda_.4} parent=1 // pred_check_branch
      %24 = sbr.rel (0) target = $region9
    $region8: #{_lambda_.4} parent=1 // pred_region
      _
    $region9: #{_lambda_.4} parent=1 // pred_fallthru
      _
    // Predicated region
    $region10: #{_lambda_.4} parent=1 // pred_check
      _
    $region11: #{_lambda_.4} parent=1 // pred_check_branch
      %26 = sbr.rel (0) target = $region13
    $region12: #{_lambda_.4} parent=1 // pred_region
      _
    $region13: #{_lambda_.4} parent=1 // pred_fallthru
      _
    // Predicated region
    $region14: #{_lambda_.4} parent=1 // pred_check
      _
    $region15: #{_lambda_.4} parent=1 // pred_check_branch
      %28 = sbr.rel (0) target = $region17
    $region16: #{_lambda_.4} parent=1 // pred_region
      %s30 = ssub.s32 16, 16
      %31 = vsyncadd [#allocation3], %s30
      %s33 = sshll.u32 %s3, 4
      %s34 = int_to_ptr.vmem [resolvable:$true] %s33
      %36 = dma.vmem_to_smem %s34, 16, [#allocation2], [#allocation3]
    $region17: #{_lambda_.4} parent=1 // pred_fallthru
      _
    // Predicated region
    $region18: #{_lambda_.4} parent=1 // pred_check
      _
    $region19: #{_lambda_.4} parent=1 // pred_check_branch
      %38 = sbr.rel (0) target = $region21
    $region20: #{_lambda_.4} parent=1 // pred_region
      _
    $region21: #{_lambda_.4} parent=1 // pred_fallthru
      _
    // Predicated region
    $region22: #{_lambda_.4} parent=1 // pred_check
      _
    $region23: #{_lambda_.4} parent=1 // pred_check_branch
      %40 = sbr.rel (0) target = $region25
    $region24: #{_lambda_.4} parent=1 // pred_region
      %41 = dma.done [#allocation3], 16
    $region25: #{_lambda_.4} parent=1 // pred_fallthru
      _
    %42 = sfence
    %s43 = sadd.s32 0, 0
    %s44 = smul.u32 8, %s43
    %p45 = scmp.lt.s32.totalorder %s44, 7
    %s46 = scalar_select %p45, %s44, 7
    %s47 = smul.addr %s46, 4
    %s48 = scalar_lea.vmem %s0, %s47
    %s49 = sadd.s32 0, 0
    %s50 = smul.u32 8, %s49
    %p51 = scmp.lt.s32.totalorder %s50, 7
    %s52 = scalar_select %p51, %s50, 7
    %s53 = smul.addr %s52, 4
    %s54 = scalar_lea.vmem %s5, %s53
    %s55 = sadd.s32 0, 0
    %p56 = scmp.lt.s32.totalorder %s55, 0
    %s57 = scalar_select %p56, %s55, 0
    %s58 = smul.addr %s57, 4
    %s59 = smul.addr %s58, 8
    %s60 = scalar_lea.vmem %s6, %s59
    %s61 = sadd.s32 0, 0
    %s62 = smul.u32 8, %s61
    %p63 = scmp.lt.s32.totalorder %s62, 7
    %s64 = scalar_select %p63, %s62, 7
    %s65 = smul.addr %s64, 4
    %s66 = scalar_lea.vmem %s0, %s65
    %s67 = sadd.s32 0, 0
    %s68 = smul.u32 8, %s67
    %s69 = sadd.s32 0, 0
    %s70 = smul.u32 8, %s69
    %p71 = scmp.lt.s32.totalorder %s70, 7
    %s72 = scalar_select %p71, %s70, 7
    %s73 = smul.addr %s72, 4
    %s74 = scalar_lea.vmem %s5, %s73
    %s75 = sadd.s32 0, 0
    %s76 = smul.u32 8, %s75
    %s77 = sadd.s32 0, 0
    %p78 = scmp.lt.s32.totalorder %s77, 0
    %s79 = scalar_select %p78, %s77, 0
    %s80 = smul.addr %s79, 4
    %s81 = smul.addr %s80, 8
    %s82 = scalar_lea.vmem %s6, %s81
    %s83 = sadd.s32 0, 0
    %v85 = vld [vmem:[%s66] sm:$0xff]
    %v86 = vld [vmem:[%s66 + $0x8] sm:$0xff]
    %v87 = vld [vmem:[%s66 + $0x10] sm:$0xff]
    %v88 = vld [vmem:[%s66 + $0x18] sm:$0xff]
    %v89 = vld [vmem:[%s66 + $0x20] sm:$0xff]
    %v90 = vld [vmem:[%s66 + $0x28] sm:$0xff]
    %v91 = vld [vmem:[%s66 + $0x30] sm:$0xff]
    %v92 = vld [vmem:[%s66 + $0x38] sm:$0xff]
    %v93 = vunpack.c.l.bf16 %v85
    %v94 = vunpack.c.h.bf16 %v85
    %v95 = vunpack.c.l.bf16 %v86
    %v96 = vunpack.c.h.bf16 %v86
    %v97 = vunpack.c.l.bf16 %v87
    %v98 = vunpack.c.h.bf16 %v87
    %v99 = vunpack.c.l.bf16 %v88
    %v100 = vunpack.c.h.bf16 %v88
    %v101 = vunpack.c.l.bf16 %v89
    %v102 = vunpack.c.h.bf16 %v89
    %v103 = vunpack.c.l.bf16 %v90
    %v104 = vunpack.c.h.bf16 %v90
    %v105 = vunpack.c.l.bf16 %v91
    %v106 = vunpack.c.h.bf16 %v91
    %v107 = vunpack.c.l.bf16 %v92
    %v108 = vunpack.c.h.bf16 %v92
    %v109 = vld [vmem:[%s2] sm:$0xff]
    %v110 = vld [vmem:[%s2 + $0x8] sm:$0xff]
    %112 = vset.pattern.permute.xlu0 0
    %113 = vperm.xlu0 %112, %v109
    %v114 = vpop.permute.xlu0 %113
    %117 = vset.pattern.permute.xlu0 0
    %118 = vperm.xlu0 %117, %v110
    %v119 = vpop.permute.xlu0 %118
    %v121 = vmul.f32 %v114, %v93
    %v122 = vmul.f32 %v114, %v94
    %v123 = vmul.f32 %v114, %v95
    %v124 = vmul.f32 %v114, %v96
    %v125 = vmul.f32 %v114, %v97
    %v126 = vmul.f32 %v114, %v98
    %v127 = vmul.f32 %v114, %v99
    %v128 = vmul.f32 %v114, %v100
    %v129 = vmul.f32 %v119, %v101
    %v130 = vmul.f32 %v119, %v102
    %v131 = vmul.f32 %v119, %v103
    %v132 = vmul.f32 %v119, %v104
    %v133 = vmul.f32 %v119, %v105
    %v134 = vmul.f32 %v119, %v106
    %v135 = vmul.f32 %v119, %v107
    %v136 = vmul.f32 %v119, %v108
    %137 = vset.pattern.permute.xlu0 1
    %138 = vperm.xlu0 %137, %v109
    %v139 = vpop.permute.xlu0 %138
    %141 = vset.pattern.permute.xlu0 1
    %142 = vperm.xlu0 %141, %v110
    %v143 = vpop.permute.xlu0 %142
    %v145 = vadd.f32 %v121, %v139
    %v146 = vadd.f32 %v122, %v139
    %v147 = vadd.f32 %v123, %v139
    %v148 = vadd.f32 %v124, %v139
    %v149 = vadd.f32 %v125, %v139
    %v150 = vadd.f32 %v126, %v139
    %v151 = vadd.f32 %v127, %v139
    %v152 = vadd.f32 %v128, %v139
    %v153 = vadd.f32 %v129, %v143
    %v154 = vadd.f32 %v130, %v143
    %v155 = vadd.f32 %v131, %v143
    %v156 = vadd.f32 %v132, %v143
    %v157 = vadd.f32 %v133, %v143
    %v158 = vadd.f32 %v134, %v143
    %v159 = vadd.f32 %v135, %v143
    %v160 = vadd.f32 %v136, %v143
    %v161 = vmax.f32 %v145, 0.0
    %v162 = vmax.f32 %v146, 0.0
    %v163 = vmax.f32 %v147, 0.0
    %v164 = vmax.f32 %v148, 0.0
    %v165 = vmax.f32 %v149, 0.0
    %v166 = vmax.f32 %v150, 0.0
    %v167 = vmax.f32 %v151, 0.0
    %v168 = vmax.f32 %v152, 0.0
    %v169 = vmax.f32 %v153, 0.0
    %v170 = vmax.f32 %v154, 0.0
    %v171 = vmax.f32 %v155, 0.0
    %v172 = vmax.f32 %v156, 0.0
    %v173 = vmax.f32 %v157, 0.0
    %v174 = vmax.f32 %v158, 0.0
    %v175 = vmax.f32 %v159, 0.0
    %v176 = vmax.f32 %v160, 0.0
    %s177 = sld [smem:[#allocation2]]
    %v178 = vstv %s177
    %v179 = vmul.f32 %v161, %v178
    %v180 = vmul.f32 %v162, %v178
    %v181 = vmul.f32 %v163, %v178
    %v182 = vmul.f32 %v164, %v178
    %v183 = vmul.f32 %v165, %v178
    %v184 = vmul.f32 %v166, %v178
    %v185 = vmul.f32 %v167, %v178
    %v186 = vmul.f32 %v168, %v178
    %v187 = vmul.f32 %v169, %v178
    %v188 = vmul.f32 %v170, %v178
    %v189 = vmul.f32 %v171, %v178
    %v190 = vmul.f32 %v172, %v178
    %v191 = vmul.f32 %v173, %v178
    %v192 = vmul.f32 %v174, %v178
    %v193 = vmul.f32 %v175, %v178
    %v194 = vmul.f32 %v176, %v178
    %s195 = sld [smem:[#allocation2 + $0x1]]
    %v196 = vstv %s195
    %v197 = vadd.f32 %v179, %v196
    %v198 = vadd.f32 %v180, %v196
    %v199 = vadd.f32 %v181, %v196
    %v200 = vadd.f32 %v182, %v196
    %v201 = vadd.f32 %v183, %v196
    %v202 = vadd.f32 %v184, %v196
    %v203 = vadd.f32 %v185, %v196
    %v204 = vadd.f32 %v186, %v196
    %v205 = vadd.f32 %v187, %v196
    %v206 = vadd.f32 %v188, %v196
    %v207 = vadd.f32 %v189, %v196
    %v208 = vadd.f32 %v190, %v196
    %v209 = vadd.f32 %v191, %v196
    %v210 = vadd.f32 %v192, %v196
    %v211 = vadd.f32 %v193, %v196
    %v212 = vadd.f32 %v194, %v196
    %v213 = vround.ne.pseudo %v197
    %v214 = vround.ne.pseudo %v198
    %v215 = vround.ne.pseudo %v199
    %v216 = vround.ne.pseudo %v200
    %v217 = vround.ne.pseudo %v201
    %v218 = vround.ne.pseudo %v202
    %v219 = vround.ne.pseudo %v203
    %v220 = vround.ne.pseudo %v204
    %v221 = vround.ne.pseudo %v205
    %v222 = vround.ne.pseudo %v206
    %v223 = vround.ne.pseudo %v207
    %v224 = vround.ne.pseudo %v208
    %v225 = vround.ne.pseudo %v209
    %v226 = vround.ne.pseudo %v210
    %v227 = vround.ne.pseudo %v211
    %v228 = vround.ne.pseudo %v212
    %v229 = vld [vmem:[%s1] sm:$0xf]
    %v230 = vld [vmem:[%s1 + $0x4] sm:$0xf]
    %v231 = vld [vmem:[%s1 + $0x8] sm:$0xf]
    %v232 = vld [vmem:[%s1 + $0xc] sm:$0xf]
    %v233 = vpack.c.bf16 %v221, %v213
    %v234 = vpack.c.bf16 %v222, %v214
    %v235 = vpack.c.bf16 %v223, %v215
    %v236 = vpack.c.bf16 %v224, %v216
    %v237 = vpack.c.bf16 %v225, %v217
    %v238 = vpack.c.bf16 %v226, %v218
    %v239 = vpack.c.bf16 %v227, %v219
    %v240 = vpack.c.bf16 %v228, %v220
    %v245 = vunpack.c.l.b16 %v229
    %v246 = vunpack.c.l.b16 %v230
    %v247 = vunpack.c.l.b16 %v231
    %v248 = vunpack.c.l.b16 %v232
    %v249 = vpack.c.b16 %v246, %v245
    %v250 = vpack.c.b16 %v248, %v247
    %vm251 = vcmask 130048
    %v253 = vsel %vm251, %v249, 0
    %v256 = vsel %vm251, %v250, 0
    %258 = vmatprep.subr.bf16.mxu0 0
    %259 = vmatpush1.bf16.msra.mxu0 0
    %260 = vmatprep.subr.bf16.mxu0 0
    %261 = vmatpush1.bf16.msra.mxu0 0
    %262 = vmatprep.subr.bf16.mxu0 0
    %263 = vmatpush1.bf16.msra.mxu0 0
    %264 = vmatprep.subr.bf16.mxu0 0
    %265 = vmatpush1.bf16.msra.mxu0 0
    %266 = vmatprep.subr.bf16.mxu0 0
    %267 = vmatpush1.bf16.msra.mxu0 0
    %268 = vmatprep.subr.bf16.mxu0 0
    %269 = vmatpush1.bf16.msra.mxu0 0
    %270 = vmatprep.subr.bf16.mxu0 0
    %271 = vmatpush1.bf16.msra.mxu0 0
    %272 = vmatprep.subr.bf16.mxu0 %v234
    %273 = vmatpush1.bf16.msra.mxu0 %v233
    %274 = vmatprep.subr.bf16.mxu0 0
    %275 = vmatpush2.bf16.msra.mxu0 0
    %276 = vmatprep.subr.bf16.mxu0 0
    %277 = vmatpush2.bf16.msra.mxu0 0
    %278 = vmatprep.subr.bf16.mxu0 0
    %279 = vmatpush2.bf16.msra.mxu0 0
    %280 = vmatprep.subr.bf16.mxu0 0
    %281 = vmatpush2.bf16.msra.mxu0 0
    %282 = vmatprep.subr.bf16.mxu0 0
    %283 = vmatpush2.bf16.msra.mxu0 0
    %284 = vmatprep.subr.bf16.mxu0 0
    %285 = vmatpush2.bf16.msra.mxu0 0
    %286 = vmatprep.subr.bf16.mxu0 0
    %287 = vmatpush2.bf16.msra.mxu0 0
    %288 = vmatprep.subr.bf16.mxu0 0
    %289 = vmatpush2.bf16.msra.mxu0 0
    %290 = vmatprep.mubr.bf16.mxu0 0
    %291 = vmatmul.mubr.bf16.gmra.mxu0 %v253
    %v292 = vpop.f32.mrf.mxu0
    %v293 = vadd.f32 0.0, %v292
    %v294 = vpop.f32.mrf.mxu0
    %v295 = vadd.f32 0.0, %v294
    %v296 = vpop.f32.mrf.mxu0
    %v297 = vadd.f32 0.0, %v296
    %v298 = vpop.f32.mrf.mxu0
    %v299 = vadd.f32 0.0, %v298
    %300 = vmatprep.mubr.bf16.mxu0 0
    %301 = vmatmul.mubr.bf16.gmra.mxu0 %v256
    %v302 = vpop.f32.mrf.mxu0
    %v303 = vadd.f32 0.0, %v302
    %v304 = vpop.f32.mrf.mxu0
    %v305 = vadd.f32 0.0, %v304
    %v306 = vpop.f32.mrf.mxu0
    %v307 = vadd.f32 0.0, %v306
    %v308 = vpop.f32.mrf.mxu0
    %v309 = vadd.f32 0.0, %v308
    %310 = vdwg.mxu0
    %311 = vmatprep.subr.bf16.mxu0 0
    %312 = vmatpush1.bf16.msra.mxu0 0
    %313 = vmatprep.subr.bf16.mxu0 0
    %314 = vmatpush1.bf16.msra.mxu0 0
    %315 = vmatprep.subr.bf16.mxu0 0
    %316 = vmatpush1.bf16.msra.mxu0 0
    %317 = vmatprep.subr.bf16.mxu0 0
    %318 = vmatpush1.bf16.msra.mxu0 0
    %319 = vmatprep.subr.bf16.mxu0 0
    %320 = vmatpush1.bf16.msra.mxu0 0
    %321 = vmatprep.subr.bf16.mxu0 0
    %322 = vmatpush1.bf16.msra.mxu0 0
    %323 = vmatprep.subr.bf16.mxu0 0
    %324 = vmatpush1.bf16.msra.mxu0 0
    %325 = vmatprep.subr.bf16.mxu0 %v236
    %326 = vmatpush1.bf16.msra.mxu0 %v235
    %327 = vmatprep.subr.bf16.mxu0 0
    %328 = vmatpush2.bf16.msra.mxu0 0
    %329 = vmatprep.subr.bf16.mxu0 0
    %330 = vmatpush2.bf16.msra.mxu0 0
    %331 = vmatprep.subr.bf16.mxu0 0
    %332 = vmatpush2.bf16.msra.mxu0 0
    %333 = vmatprep.subr.bf16.mxu0 0
    %334 = vmatpush2.bf16.msra.mxu0 0
    %335 = vmatprep.subr.bf16.mxu0 0
    %336 = vmatpush2.bf16.msra.mxu0 0
    %337 = vmatprep.subr.bf16.mxu0 0
    %338 = vmatpush2.bf16.msra.mxu0 0
    %339 = vmatprep.subr.bf16.mxu0 0
    %340 = vmatpush2.bf16.msra.mxu0 0
    %341 = vmatprep.subr.bf16.mxu0 0
    %342 = vmatpush2.bf16.msra.mxu0 0
    %343 = vmatprep.mubr.bf16.mxu0 0
    %344 = vmatmul.mubr.bf16.gmra.mxu0 %v253
    %v345 = vpop.f32.mrf.mxu0
    %v346 = vadd.f32 0.0, %v345
    %v347 = vpop.f32.mrf.mxu0
    %v348 = vadd.f32 0.0, %v347
    %v349 = vpop.f32.mrf.mxu0
    %v350 = vadd.f32 0.0, %v349
    %v351 = vpop.f32.mrf.mxu0
    %v352 = vadd.f32 0.0, %v351
    %353 = vmatprep.mubr.bf16.mxu0 0
    %354 = vmatmul.mubr.bf16.gmra.mxu0 %v256
    %v355 = vpop.f32.mrf.mxu0
    %v356 = vadd.f32 0.0, %v355
    %v357 = vpop.f32.mrf.mxu0
    %v358 = vadd.f32 0.0, %v357
    %v359 = vpop.f32.mrf.mxu0
    %v360 = vadd.f32 0.0, %v359
    %v361 = vpop.f32.mrf.mxu0
    %v362 = vadd.f32 0.0, %v361
    %363 = vdwg.mxu0
    %364 = vmatprep.subr.bf16.mxu0 0
    %365 = vmatpush1.bf16.msra.mxu0 0
    %366 = vmatprep.subr.bf16.mxu0 0
    %367 = vmatpush1.bf16.msra.mxu0 0
    %368 = vmatprep.subr.bf16.mxu0 0
    %369 = vmatpush1.bf16.msra.mxu0 0
    %370 = vmatprep.subr.bf16.mxu0 0
    %371 = vmatpush1.bf16.msra.mxu0 0
    %372 = vmatprep.subr.bf16.mxu0 0
    %373 = vmatpush1.bf16.msra.mxu0 0
    %374 = vmatprep.subr.bf16.mxu0 0
    %375 = vmatpush1.bf16.msra.mxu0 0
    %376 = vmatprep.subr.bf16.mxu0 0
    %377 = vmatpush1.bf16.msra.mxu0 0
    %378 = vmatprep.subr.bf16.mxu0 %v238
    %379 = vmatpush1.bf16.msra.mxu0 %v237
    %380 = vmatprep.subr.bf16.mxu0 0
    %381 = vmatpush2.bf16.msra.mxu0 0
    %382 = vmatprep.subr.bf16.mxu0 0
    %383 = vmatpush2.bf16.msra.mxu0 0
    %384 = vmatprep.subr.bf16.mxu0 0
    %385 = vmatpush2.bf16.msra.mxu0 0
    %386 = vmatprep.subr.bf16.mxu0 0
    %387 = vmatpush2.bf16.msra.mxu0 0
    %388 = vmatprep.subr.bf16.mxu0 0
    %389 = vmatpush2.bf16.msra.mxu0 0
    %390 = vmatprep.subr.bf16.mxu0 0
    %391 = vmatpush2.bf16.msra.mxu0 0
    %392 = vmatprep.subr.bf16.mxu0 0
    %393 = vmatpush2.bf16.msra.mxu0 0
    %394 = vmatprep.subr.bf16.mxu0 0
    %395 = vmatpush2.bf16.msra.mxu0 0
    %396 = vmatprep.mubr.bf16.mxu0 0
    %397 = vmatmul.mubr.bf16.gmra.mxu0 %v253
    %v398 = vpop.f32.mrf.mxu0
    %v399 = vadd.f32 0.0, %v398
    %v400 = vpop.f32.mrf.mxu0
    %v401 = vadd.f32 0.0, %v400
    %v402 = vpop.f32.mrf.mxu0
    %v403 = vadd.f32 0.0, %v402
    %v404 = vpop.f32.mrf.mxu0
    %v405 = vadd.f32 0.0, %v404
    %406 = vmatprep.mubr.bf16.mxu0 0
    %407 = vmatmul.mubr.bf16.gmra.mxu0 %v256
    %v408 = vpop.f32.mrf.mxu0
    %v409 = vadd.f32 0.0, %v408
    %v410 = vpop.f32.mrf.mxu0
    %v411 = vadd.f32 0.0, %v410
    %v412 = vpop.f32.mrf.mxu0
    %v413 = vadd.f32 0.0, %v412
    %v414 = vpop.f32.mrf.mxu0
    %v415 = vadd.f32 0.0, %v414
    %416 = vdwg.mxu0
    %417 = vmatprep.subr.bf16.mxu0 0
    %418 = vmatpush1.bf16.msra.mxu0 0
    %419 = vmatprep.subr.bf16.mxu0 0
    %420 = vmatpush1.bf16.msra.mxu0 0
    %421 = vmatprep.subr.bf16.mxu0 0
    %422 = vmatpush1.bf16.msra.mxu0 0
    %423 = vmatprep.subr.bf16.mxu0 0
    %424 = vmatpush1.bf16.msra.mxu0 0
    %425 = vmatprep.subr.bf16.mxu0 0
    %426 = vmatpush1.bf16.msra.mxu0 0
    %427 = vmatprep.subr.bf16.mxu0 0
    %428 = vmatpush1.bf16.msra.mxu0 0
    %429 = vmatprep.subr.bf16.mxu0 0
    %430 = vmatpush1.bf16.msra.mxu0 0
    %431 = vmatprep.subr.bf16.mxu0 %v240
    %432 = vmatpush1.bf16.msra.mxu0 %v239
    %433 = vmatprep.subr.bf16.mxu0 0
    %434 = vmatpush2.bf16.msra.mxu0 0
    %435 = vmatprep.subr.bf16.mxu0 0
    %436 = vmatpush2.bf16.msra.mxu0 0
    %437 = vmatprep.subr.bf16.mxu0 0
    %438 = vmatpush2.bf16.msra.mxu0 0
    %439 = vmatprep.subr.bf16.mxu0 0
    %440 = vmatpush2.bf16.msra.mxu0 0
    %441 = vmatprep.subr.bf16.mxu0 0
    %442 = vmatpush2.bf16.msra.mxu0 0
    %443 = vmatprep.subr.bf16.mxu0 0
    %444 = vmatpush2.bf16.msra.mxu0 0
    %445 = vmatprep.subr.bf16.mxu0 0
    %446 = vmatpush2.bf16.msra.mxu0 0
    %447 = vmatprep.subr.bf16.mxu0 0
    %448 = vmatpush2.bf16.msra.mxu0 0
    %449 = vmatprep.mubr.bf16.mxu0 0
    %450 = vmatmul.mubr.bf16.gmra.mxu0 %v253
    %v451 = vpop.f32.mrf.mxu0
    %v452 = vadd.f32 0.0, %v451
    %v453 = vpop.f32.mrf.mxu0
    %v454 = vadd.f32 0.0, %v453
    %v455 = vpop.f32.mrf.mxu0
    %v456 = vadd.f32 0.0, %v455
    %v457 = vpop.f32.mrf.mxu0
    %v458 = vadd.f32 0.0, %v457
    %459 = vmatprep.mubr.bf16.mxu0 0
    %460 = vmatmul.mubr.bf16.gmra.mxu0 %v256
    %v461 = vpop.f32.mrf.mxu0
    %v462 = vadd.f32 0.0, %v461
    %v463 = vpop.f32.mrf.mxu0
    %v464 = vadd.f32 0.0, %v463
    %v465 = vpop.f32.mrf.mxu0
    %v466 = vadd.f32 0.0, %v465
    %v467 = vpop.f32.mrf.mxu0
    %v468 = vadd.f32 0.0, %v467
    %469 = vdwg.mxu0
    %v470 = vpack.c.bf16 %v297, %v293
    %v471 = vpack.c.bf16 %v299, %v295
    %v472 = vpack.c.bf16 %v350, %v346
    %v473 = vpack.c.bf16 %v352, %v348
    %v474 = vpack.c.bf16 %v403, %v399
    %v475 = vpack.c.bf16 %v405, %v401
    %v476 = vpack.c.bf16 %v456, %v452
    %v477 = vpack.c.bf16 %v458, %v454
    %v478 = vpack.c.bf16 %v307, %v303
    %v479 = vpack.c.bf16 %v309, %v305
    %v480 = vpack.c.bf16 %v360, %v356
    %v481 = vpack.c.bf16 %v362, %v358
    %v482 = vpack.c.bf16 %v413, %v409
    %v483 = vpack.c.bf16 %v415, %v411
    %v484 = vpack.c.bf16 %v466, %v462
    %v485 = vpack.c.bf16 %v468, %v464
    %v502 = vunpack.c.l.b16 %v470
    %v503 = vunpack.c.l.b16 %v471
    %v504 = vunpack.c.l.b16 %v472
    %v505 = vunpack.c.l.b16 %v473
    %v506 = vunpack.c.l.b16 %v474
    %v507 = vunpack.c.l.b16 %v475
    %v508 = vunpack.c.l.b16 %v476
    %v509 = vunpack.c.l.b16 %v477
    %v510 = vunpack.c.h.b16 %v470
    %v511 = vunpack.c.h.b16 %v471
    %v512 = vunpack.c.h.b16 %v472
    %v513 = vunpack.c.h.b16 %v473
    %v514 = vunpack.c.h.b16 %v474
    %v515 = vunpack.c.h.b16 %v475
    %v516 = vunpack.c.h.b16 %v476
    %v517 = vunpack.c.h.b16 %v477
    %v518 = vunpack.c.l.b16 %v478
    %v519 = vunpack.c.l.b16 %v479
    %v520 = vunpack.c.l.b16 %v480
    %v521 = vunpack.c.l.b16 %v481
    %v522 = vunpack.c.l.b16 %v482
    %v523 = vunpack.c.l.b16 %v483
    %v524 = vunpack.c.l.b16 %v484
    %v525 = vunpack.c.l.b16 %v485
    %v526 = vunpack.c.h.b16 %v478
    %v527 = vunpack.c.h.b16 %v479
    %v528 = vunpack.c.h.b16 %v480
    %v529 = vunpack.c.h.b16 %v481
    %v530 = vunpack.c.h.b16 %v482
    %v531 = vunpack.c.h.b16 %v483
    %v532 = vunpack.c.h.b16 %v484
    %v533 = vunpack.c.h.b16 %v485
    %v534 = vpack.c.b16 %v503, %v502
    %v535 = vpack.c.b16 %v505, %v504
    %v536 = vpack.c.b16 %v507, %v506
    %v537 = vpack.c.b16 %v509, %v508
    %v538 = vpack.c.b16 %v511, %v510
    %v539 = vpack.c.b16 %v513, %v512
    %v540 = vpack.c.b16 %v515, %v514
    %v541 = vpack.c.b16 %v517, %v516
    %v542 = vpack.c.b16 %v519, %v518
    %v543 = vpack.c.b16 %v521, %v520
    %v544 = vpack.c.b16 %v523, %v522
    %v545 = vpack.c.b16 %v525, %v524
    %v546 = vpack.c.b16 %v527, %v526
    %v547 = vpack.c.b16 %v529, %v528
    %v548 = vpack.c.b16 %v531, %v530
    %v549 = vpack.c.b16 %v533, %v532
    %566 = vst [vmem:[%s74] sm:$0xff] %v534
    %567 = vst [vmem:[%s74 + $0x8] sm:$0xff] %v535
    %568 = vst [vmem:[%s74 + $0x10] sm:$0xff] %v536
    %569 = vst [vmem:[%s74 + $0x18] sm:$0xff] %v537
    %570 = vst [vmem:[%s74 + $0x20] sm:$0xff] %v538
    %571 = vst [vmem:[%s74 + $0x28] sm:$0xff] %v539
    %572 = vst [vmem:[%s74 + $0x30] sm:$0xff] %v540
    %573 = vst [vmem:[%s74 + $0x38] sm:$0xff] %v541
    %574 = vst [vmem:[%s74 + $0x40] sm:$0xff] %v542
    %575 = vst [vmem:[%s74 + $0x48] sm:$0xff] %v543
    %576 = vst [vmem:[%s74 + $0x50] sm:$0xff] %v544
    %577 = vst [vmem:[%s74 + $0x58] sm:$0xff] %v545
    %578 = vst [vmem:[%s74 + $0x60] sm:$0xff] %v546
    %579 = vst [vmem:[%s74 + $0x68] sm:$0xff] %v547
    %580 = vst [vmem:[%s74 + $0x70] sm:$0xff] %v548
    %581 = vst [vmem:[%s74 + $0x78] sm:$0xff] %v549
    %v582 = vld [vmem:[%s4] sm:$0xff]
    %v584 = vlaneseq
    %v585 = vshrl.u32 %v584, 7
    %v586 = vsub.s32 0, %v585
    %v587 = vrot.slane %v582, %v586
    %v588 = vlaneseq
    %v589 = vshrl.u32 %v588, 7
    %v590 = vsub.s32 1, %v589
    %v591 = vrot.slane %v582, %v590
    %v592 = vlaneseq
    %v593 = vshrl.u32 %v592, 7
    %v594 = vsub.s32 2, %v593
    %v595 = vrot.slane %v582, %v594
    %v596 = vlaneseq
    %v597 = vshrl.u32 %v596, 7
    %v598 = vsub.s32 3, %v597
    %v599 = vrot.slane %v582, %v598
    %v600 = vlaneseq
    %v601 = vshrl.u32 %v600, 7
    %v602 = vsub.s32 4, %v601
    %v603 = vrot.slane %v582, %v602
    %v604 = vlaneseq
    %v605 = vshrl.u32 %v604, 7
    %v606 = vsub.s32 5, %v605
    %v607 = vrot.slane %v582, %v606
    %v608 = vlaneseq
    %v609 = vshrl.u32 %v608, 7
    %v610 = vsub.s32 6, %v609
    %v611 = vrot.slane %v582, %v610
    %v612 = vlaneseq
    %v613 = vshrl.u32 %v612, 7
    %v614 = vsub.s32 7, %v613
    %v615 = vrot.slane %v582, %v614
    %v624 = vmul.f32 %v293, %v587
    %v625 = vmul.f32 %v295, %v591
    %v626 = vmul.f32 %v346, %v595
    %v627 = vmul.f32 %v348, %v599
    %v628 = vmul.f32 %v399, %v603
    %v629 = vmul.f32 %v401, %v607
    %v630 = vmul.f32 %v452, %v611
    %v631 = vmul.f32 %v454, %v615
    %v632 = vmul.f32 %v297, %v587
    %v633 = vmul.f32 %v299, %v591
    %v634 = vmul.f32 %v350, %v595
    %v635 = vmul.f32 %v352, %v599
    %v636 = vmul.f32 %v403, %v603
    %v637 = vmul.f32 %v405, %v607
    %v638 = vmul.f32 %v456, %v611
    %v639 = vmul.f32 %v458, %v615
    %v640 = vmul.f32 %v303, %v587
    %v641 = vmul.f32 %v305, %v591
    %v642 = vmul.f32 %v356, %v595
    %v643 = vmul.f32 %v358, %v599
    %v644 = vmul.f32 %v409, %v603
    %v645 = vmul.f32 %v411, %v607
    %v646 = vmul.f32 %v462, %v611
    %v647 = vmul.f32 %v464, %v615
    %v648 = vmul.f32 %v307, %v587
    %v649 = vmul.f32 %v309, %v591
    %v650 = vmul.f32 %v360, %v595
    %v651 = vmul.f32 %v362, %v599
    %v652 = vmul.f32 %v413, %v603
    %v653 = vmul.f32 %v415, %v607
    %v654 = vmul.f32 %v466, %v611
    %v655 = vmul.f32 %v468, %v615
    %v656 = vadd.f32 %v624, %v625
    %v657 = vadd.f32 %v656, %v626
    %v658 = vadd.f32 %v657, %v627
    %v659 = vadd.f32 %v658, %v628
    %v660 = vadd.f32 %v659, %v629
    %v661 = vadd.f32 %v660, %v630
    %v662 = vadd.f32 %v661, %v631
    %663 = vadd.xlane.f32.xlu0 %v662
    %v664 = vpop.xlane.xlu0 %663
    %v665 = vadd.f32 %v632, %v633
    %v666 = vadd.f32 %v665, %v634
    %v667 = vadd.f32 %v666, %v635
    %v668 = vadd.f32 %v667, %v636
    %v669 = vadd.f32 %v668, %v637
    %v670 = vadd.f32 %v669, %v638
    %v671 = vadd.f32 %v670, %v639
    %672 = vadd.xlane.f32.xlu0 %v671
    %v673 = vpop.xlane.xlu0 %672
    %v674 = vadd.f32 %v640, %v641
    %v675 = vadd.f32 %v674, %v642
    %v676 = vadd.f32 %v675, %v643
    %v677 = vadd.f32 %v676, %v644
    %v678 = vadd.f32 %v677, %v645
    %v679 = vadd.f32 %v678, %v646
    %v680 = vadd.f32 %v679, %v647
    %681 = vadd.xlane.f32.xlu0 %v680
    %v682 = vpop.xlane.xlu0 %681
    %v683 = vadd.f32 %v648, %v649
    %v684 = vadd.f32 %v683, %v650
    %v685 = vadd.f32 %v684, %v651
    %v686 = vadd.f32 %v685, %v652
    %v687 = vadd.f32 %v686, %v653
    %v688 = vadd.f32 %v687, %v654
    %v689 = vadd.f32 %v688, %v655
    %690 = vadd.xlane.f32.xlu0 %v689
    %v691 = vpop.xlane.xlu0 %690
    %v692 = vmul.f32 %v624, %v624
    %v693 = vmul.f32 %v625, %v625
    %v694 = vmul.f32 %v626, %v626
    %v695 = vmul.f32 %v627, %v627
    %v696 = vmul.f32 %v628, %v628
    %v697 = vmul.f32 %v629, %v629
    %v698 = vmul.f32 %v630, %v630
    %v699 = vmul.f32 %v631, %v631
    %v700 = vmul.f32 %v632, %v632
    %v701 = vmul.f32 %v633, %v633
    %v702 = vmul.f32 %v634, %v634
    %v703 = vmul.f32 %v635, %v635
    %v704 = vmul.f32 %v636, %v636
    %v705 = vmul.f32 %v637, %v637
    %v706 = vmul.f32 %v638, %v638
    %v707 = vmul.f32 %v639, %v639
    %v708 = vmul.f32 %v640, %v640
    %v709 = vmul.f32 %v641, %v641
    %v710 = vmul.f32 %v642, %v642
    %v711 = vmul.f32 %v643, %v643
    %v712 = vmul.f32 %v644, %v644
    %v713 = vmul.f32 %v645, %v645
    %v714 = vmul.f32 %v646, %v646
    %v715 = vmul.f32 %v647, %v647
    %v716 = vmul.f32 %v648, %v648
    %v717 = vmul.f32 %v649, %v649
    %v718 = vmul.f32 %v650, %v650
    %v719 = vmul.f32 %v651, %v651
    %v720 = vmul.f32 %v652, %v652
    %v721 = vmul.f32 %v653, %v653
    %v722 = vmul.f32 %v654, %v654
    %v723 = vmul.f32 %v655, %v655
    %v724 = vadd.f32 %v692, %v693
    %v725 = vadd.f32 %v724, %v694
    %v726 = vadd.f32 %v725, %v695
    %v727 = vadd.f32 %v726, %v696
    %v728 = vadd.f32 %v727, %v697
    %v729 = vadd.f32 %v728, %v698
    %v730 = vadd.f32 %v729, %v699
    %731 = vadd.xlane.f32.xlu0 %v730
    %v732 = vpop.xlane.xlu0 %731
    %v733 = vadd.f32 %v700, %v701
    %v734 = vadd.f32 %v733, %v702
    %v735 = vadd.f32 %v734, %v703
    %v736 = vadd.f32 %v735, %v704
    %v737 = vadd.f32 %v736, %v705
    %v738 = vadd.f32 %v737, %v706
    %v739 = vadd.f32 %v738, %v707
    %740 = vadd.xlane.f32.xlu0 %v739
    %v741 = vpop.xlane.xlu0 %740
    %v742 = vadd.f32 %v708, %v709
    %v743 = vadd.f32 %v742, %v710
    %v744 = vadd.f32 %v743, %v711
    %v745 = vadd.f32 %v744, %v712
    %v746 = vadd.f32 %v745, %v713
    %v747 = vadd.f32 %v746, %v714
    %v748 = vadd.f32 %v747, %v715
    %749 = vadd.xlane.f32.xlu0 %v748
    %v750 = vpop.xlane.xlu0 %749
    %v751 = vadd.f32 %v716, %v717
    %v752 = vadd.f32 %v751, %v718
    %v753 = vadd.f32 %v752, %v719
    %v754 = vadd.f32 %v753, %v720
    %v755 = vadd.f32 %v754, %v721
    %v756 = vadd.f32 %v755, %v722
    %v757 = vadd.f32 %v756, %v723
    %758 = vadd.xlane.f32.xlu0 %v757
    %v759 = vpop.xlane.xlu0 %758
    %vm760 = vcmp.gt.f32.partialorder %v582, 0.5
    %v761 = vsel %vm760, 1, 0
    %v762 = vlaneseq
    %v763 = vshrl.u32 %v762, 7
    %v764 = vsub.s32 0, %v763
    %v765 = vrot.slane %v761, %v764
    %v766 = vlaneseq
    %v767 = vshrl.u32 %v766, 7
    %v768 = vsub.s32 1, %v767
    %v769 = vrot.slane %v761, %v768
    %v770 = vlaneseq
    %v771 = vshrl.u32 %v770, 7
    %v772 = vsub.s32 2, %v771
    %v773 = vrot.slane %v761, %v772
    %v774 = vlaneseq
    %v775 = vshrl.u32 %v774, 7
    %v776 = vsub.s32 3, %v775
    %v777 = vrot.slane %v761, %v776
    %v778 = vlaneseq
    %v779 = vshrl.u32 %v778, 7
    %v780 = vsub.s32 4, %v779
    %v781 = vrot.slane %v761, %v780
    %v782 = vlaneseq
    %v783 = vshrl.u32 %v782, 7
    %v784 = vsub.s32 5, %v783
    %v785 = vrot.slane %v761, %v784
    %v786 = vlaneseq
    %v787 = vshrl.u32 %v786, 7
    %v788 = vsub.s32 6, %v787
    %v789 = vrot.slane %v761, %v788
    %v790 = vlaneseq
    %v791 = vshrl.u32 %v790, 7
    %v792 = vsub.s32 7, %v791
    %v793 = vrot.slane %v761, %v792
    %vm794 = vcmp.eq.s32.totalorder %v765, 1
    %vm795 = vcmp.eq.s32.totalorder %v769, 1
    %vm796 = vcmp.eq.s32.totalorder %v773, 1
    %vm797 = vcmp.eq.s32.totalorder %v777, 1
    %vm798 = vcmp.eq.s32.totalorder %v781, 1
    %vm799 = vcmp.eq.s32.totalorder %v785, 1
    %vm800 = vcmp.eq.s32.totalorder %v789, 1
    %vm801 = vcmp.eq.s32.totalorder %v793, 1
    %v802 = vsel %vm794, %v293, inf
    %v803 = vsel %vm795, %v295, inf
    %v804 = vsel %vm796, %v346, inf
    %v805 = vsel %vm797, %v348, inf
    %v806 = vsel %vm798, %v399, inf
    %v807 = vsel %vm799, %v401, inf
    %v808 = vsel %vm800, %v452, inf
    %v809 = vsel %vm801, %v454, inf
    %v810 = vsel %vm794, %v297, inf
    %v811 = vsel %vm795, %v299, inf
    %v812 = vsel %vm796, %v350, inf
    %v813 = vsel %vm797, %v352, inf
    %v814 = vsel %vm798, %v403, inf
    %v815 = vsel %vm799, %v405, inf
    %v816 = vsel %vm800, %v456, inf
    %v817 = vsel %vm801, %v458, inf
    %v818 = vsel %vm794, %v303, inf
    %v819 = vsel %vm795, %v305, inf
    %v820 = vsel %vm796, %v356, inf
    %v821 = vsel %vm797, %v358, inf
    %v822 = vsel %vm798, %v409, inf
    %v823 = vsel %vm799, %v411, inf
    %v824 = vsel %vm800, %v462, inf
    %v825 = vsel %vm801, %v464, inf
    %v826 = vsel %vm794, %v307, inf
    %v827 = vsel %vm795, %v309, inf
    %v828 = vsel %vm796, %v360, inf
    %v829 = vsel %vm797, %v362, inf
    %v830 = vsel %vm798, %v413, inf
    %v831 = vsel %vm799, %v415, inf
    %v832 = vsel %vm800, %v466, inf
    %v833 = vsel %vm801, %v468, inf
    %v834 = vmin.f32 %v802, %v803
    %v835 = vmin.f32 %v834, %v804
    %v836 = vmin.f32 %v835, %v805
    %v837 = vmin.f32 %v836, %v806
    %v838 = vmin.f32 %v837, %v807
    %v839 = vmin.f32 %v838, %v808
    %v840 = vmin.f32 %v839, %v809
    %841 = vmin.xlane.f32.xlu0 %v840
    %v842 = vpop.xlane.xlu0 %841
    %v843 = vmin.f32 %v810, %v811
    %v844 = vmin.f32 %v843, %v812
    %v845 = vmin.f32 %v844, %v813
    %v846 = vmin.f32 %v845, %v814
    %v847 = vmin.f32 %v846, %v815
    %v848 = vmin.f32 %v847, %v816
    %v849 = vmin.f32 %v848, %v817
    %850 = vmin.xlane.f32.xlu0 %v849
    %v851 = vpop.xlane.xlu0 %850
    %v852 = vmin.f32 %v818, %v819
    %v853 = vmin.f32 %v852, %v820
    %v854 = vmin.f32 %v853, %v821
    %v855 = vmin.f32 %v854, %v822
    %v856 = vmin.f32 %v855, %v823
    %v857 = vmin.f32 %v856, %v824
    %v858 = vmin.f32 %v857, %v825
    %859 = vmin.xlane.f32.xlu0 %v858
    %v860 = vpop.xlane.xlu0 %859
    %v861 = vmin.f32 %v826, %v827
    %v862 = vmin.f32 %v861, %v828
    %v863 = vmin.f32 %v862, %v829
    %v864 = vmin.f32 %v863, %v830
    %v865 = vmin.f32 %v864, %v831
    %v866 = vmin.f32 %v865, %v832
    %v867 = vmin.f32 %v866, %v833
    %868 = vmin.xlane.f32.xlu0 %v867
    %v869 = vpop.xlane.xlu0 %868
    %v870 = vsel %vm794, %v293, -inf
    %v871 = vsel %vm795, %v295, -inf
    %v872 = vsel %vm796, %v346, -inf
    %v873 = vsel %vm797, %v348, -inf
    %v874 = vsel %vm798, %v399, -inf
    %v875 = vsel %vm799, %v401, -inf
    %v876 = vsel %vm800, %v452, -inf
    %v877 = vsel %vm801, %v454, -inf
    %v878 = vsel %vm794, %v297, -inf
    %v879 = vsel %vm795, %v299, -inf
    %v880 = vsel %vm796, %v350, -inf
    %v881 = vsel %vm797, %v352, -inf
    %v882 = vsel %vm798, %v403, -inf
    %v883 = vsel %vm799, %v405, -inf
    %v884 = vsel %vm800, %v456, -inf
    %v885 = vsel %vm801, %v458, -inf
    %v886 = vsel %vm794, %v303, -inf
    %v887 = vsel %vm795, %v305, -inf
    %v888 = vsel %vm796, %v356, -inf
    %v889 = vsel %vm797, %v358, -inf
    %v890 = vsel %vm798, %v409, -inf
    %v891 = vsel %vm799, %v411, -inf
    %v892 = vsel %vm800, %v462, -inf
    %v893 = vsel %vm801, %v464, -inf
    %v894 = vsel %vm794, %v307, -inf
    %v895 = vsel %vm795, %v309, -inf
    %v896 = vsel %vm796, %v360, -inf
    %v897 = vsel %vm797, %v362, -inf
    %v898 = vsel %vm798, %v413, -inf
    %v899 = vsel %vm799, %v415, -inf
    %v900 = vsel %vm800, %v466, -inf
    %v901 = vsel %vm801, %v468, -inf
    %v902 = vmax.f32 %v870, %v871
    %v903 = vmax.f32 %v902, %v872
    %v904 = vmax.f32 %v903, %v873
    %v905 = vmax.f32 %v904, %v874
    %v906 = vmax.f32 %v905, %v875
    %v907 = vmax.f32 %v906, %v876
    %v908 = vmax.f32 %v907, %v877
    %909 = vmax.xlane.f32.xlu0 %v908
    %v910 = vpop.xlane.xlu0 %909
    %v911 = vmax.f32 %v878, %v879
    %v912 = vmax.f32 %v911, %v880
    %v913 = vmax.f32 %v912, %v881
    %v914 = vmax.f32 %v913, %v882
    %v915 = vmax.f32 %v914, %v883
    %v916 = vmax.f32 %v915, %v884
    %v917 = vmax.f32 %v916, %v885
    %918 = vmax.xlane.f32.xlu0 %v917
    %v919 = vpop.xlane.xlu0 %918
    %v920 = vmax.f32 %v886, %v887
    %v921 = vmax.f32 %v920, %v888
    %v922 = vmax.f32 %v921, %v889
    %v923 = vmax.f32 %v922, %v890
    %v924 = vmax.f32 %v923, %v891
    %v925 = vmax.f32 %v924, %v892
    %v926 = vmax.f32 %v925, %v893
    %927 = vmax.xlane.f32.xlu0 %v926
    %v928 = vpop.xlane.xlu0 %927
    %v929 = vmax.f32 %v894, %v895
    %v930 = vmax.f32 %v929, %v896
    %v931 = vmax.f32 %v930, %v897
    %v932 = vmax.f32 %v931, %v898
    %v933 = vmax.f32 %v932, %v899
    %v934 = vmax.f32 %v933, %v900
    %v935 = vmax.f32 %v934, %v901
    %936 = vmax.xlane.f32.xlu0 %v935
    %v937 = vpop.xlane.xlu0 %936
    %vm938 = vcmask 7168
    %v939 = vsel %vm938, %v664, %v732
    %v940 = vsel %vm938, %v673, %v741
    %v941 = vsel %vm938, %v682, %v750
    %v942 = vsel %vm938, %v691, %v759
    %vm943 = vcmask 15360
    %v944 = vsel %vm943, %v939, %v842
    %v945 = vsel %vm943, %v940, %v851
    %v946 = vsel %vm943, %v941, %v860
    %v947 = vsel %vm943, %v942, %v869
    %vm948 = vcmask 23552
    %v949 = vsel %vm948, %v944, %v910
    %v950 = vsel %vm948, %v945, %v919
    %v951 = vsel %vm948, %v946, %v928
    %v952 = vsel %vm948, %v947, %v937
    %vm953 = vcmask 31744
    %954 = vst.msk [vmem:[%s82] sm:$0xff] %vm953, %v949
    %955 = vst.msk [vmem:[%s82 + $0x8] sm:$0xff] %vm953, %v950
    %956 = vst.msk [vmem:[%s82 + $0x10] sm:$0xff] %vm953, %v951
    %957 = vst.msk [vmem:[%s82 + $0x18] sm:$0xff] %vm953, %v952
    %s958 = sadd.s32 0, 0
    %s959 = smul.u32 8, %s958
    %p960 = scmp.lt.s32.totalorder %s959, 7
    %s961 = scalar_select %p960, %s959, 7
    %s962 = smul.addr %s961, 4
    %s963 = scalar_lea.vmem %s5, %s962
    %s964 = sadd.s32 0, 0
    %p965 = scmp.lt.s32.totalorder %s964, 0
    %s966 = scalar_select %p965, %s964, 0
    %s967 = smul.addr %s966, 4
    %s968 = smul.addr %s967, 8
    %s969 = scalar_lea.vmem %s6, %s968
    // Predicated region
    $region26: #{_lambda_.4} parent=1 // pred_check
      _
    $region27: #{_lambda_.4} parent=1 // pred_check_branch
      %971 = sbr.rel (0) target = $region29
    $region28: #{_lambda_.4} parent=1 // pred_region
      %s972 = sadd.s32 0, 0
      %s973 = smul.u32 8, %s972
    $region29: #{_lambda_.4} parent=1 // pred_fallthru
      _
    // Predicated region
    $region30: #{_lambda_.4} parent=1 // pred_check
      _
    $region31: #{_lambda_.4} parent=1 // pred_check_branch
      %975 = sbr.rel (0) target = $region33
    $region32: #{_lambda_.4} parent=1 // pred_region
      %s976 = sadd.s32 0, 0
    $region33: #{_lambda_.4} parent=1 // pred_fallthru
      _
    // Predicated region
    $region34: #{_lambda_.4} parent=1 // pred_check
      _
    $region35: #{_lambda_.4} parent=1 // pred_check_branch
      %978 = sbr.rel (0) target = $region37
    $region36: #{_lambda_.4} parent=1 // pred_region
      %s979 = sadd.s32 0, 0
      %s980 = smul.u32 8, %s979
      %p981 = scmp.lt.s32.totalorder %s980, 7
      %s982 = scalar_select %p981, %s980, 7
      %s983 = smul.addr %s982, 4
      %s984 = scalar_lea.vmem %s5, %s983
    $region37: #{_lambda_.4} parent=1 // pred_fallthru
      _
    // Predicated region
    $region38: #{_lambda_.4} parent=1 // pred_check
      _
    $region39: #{_lambda_.4} parent=1 // pred_check_branch
      %986 = sbr.rel (0) target = $region41
    $region40: #{_lambda_.4} parent=1 // pred_region
      %s987 = sadd.s32 0, 0
      %p988 = scmp.lt.s32.totalorder %s987, 0
      %s989 = scalar_select %p988, %s987, 0
      %s990 = smul.addr %s989, 4
      %s991 = smul.addr %s990, 8
      %s992 = scalar_lea.vmem %s6, %s991
    $region41: #{_lambda_.4} parent=1 // pred_fallthru
      _
    %993 = vsyncpa [#allocation3], 1

</llo_original>
